<compile_context>
chip_gen: v7x
topology: tpu7x:2x2x1
jax: 0.10.0
libtpu: 0.0.40
codegen_flags: <defaults>
</compile_context>

<pallas_src>
import functools

import jax
import jax.numpy as jnp
from jax.experimental import pallas as pl
from jax.experimental.pallas import tpu as pltpu


def _convglu_kernel(x_ref, w_ref, b_ref, o_ref, *, h, w, k):
    """One padded image per grid step.

    x_ref : (1, Hp, Wp, C_in)    padded NHWC image, compute dtype (bf16/f32)
    w_ref : (2, C_out, K*K*C_in) [0]=value weights, [1]=gate weights
    b_ref : (2, C_out, 1)        f32 bias (value / gate)
    o_ref : (1, C_out, H*W)      lane-dense output slab (already NCHW order)
    """
    x = x_ref[0]                                         # (Hp, Wp, C_in) in VMEM

    # Fused im2col: build (H*W, K*K*C_in) patch matrix on-chip from K*K
    # statically shifted views.  Column order is (kh, kw, c_in), matching the
    # weight layout produced by the wrapper.
    cols = []
    for kh in range(k):
        for kw in range(k):
            cols.append(x[kh:kh + h, kw:kw + w, :].reshape(h * w, -1))
    patches = jnp.concatenate(cols, axis=-1)             # (H*W, K*K*C_in)

    # Two aligned MXU dots (value & gate), contracting the last dim of both
    # operands -> result is (C_out, H*W): transposed GEMM straight off the
    # MXU, no sublane/lane slicing, no explicit transpose, lane-dense store.
    dn = (((1,), (1,)), ((), ()))                        # A @ B^T
    a = jax.lax.dot_general(w_ref[0], patches, dn,
                            preferred_element_type=jnp.float32) + b_ref[0]
    g = jax.lax.dot_general(w_ref[1], patches, dn,
                            preferred_element_type=jnp.float32) + b_ref[1]

    o_ref[0] = (a * jax.nn.sigmoid(g)).astype(o_ref.dtype)   # (C_out, H*W)


@functools.partial(
    jax.jit, static_argnames=("kernel_size", "out_channels", "compute_dtype"))
def conv_glu_forward(x_nchw, weight, bias, *, kernel_size, out_channels,
                     compute_dtype=jnp.bfloat16):
    """ConvGLU forward.

    x_nchw : (N, C_in, H, W) float32
    weight : (2*C_out, C_in, K, K)  (PyTorch Conv2d layout)
    bias   : (2*C_out,)
    returns: (N, C_out, H, W)
    """
    n, c_in, h, w = x_nchw.shape
    k = kernel_size
    kk = k * k * c_in
    assert weight.shape == (2 * out_channels, c_in, k, k)
    assert bias.shape == (2 * out_channels,)

    total_pad = k - 1
    pad_lo = total_pad // 2
    pad_hi = total_pad - pad_lo                          # PyTorch 'same': extra on hi side
    hp, wp = h + total_pad, w + total_pad
    m = h * w
    out_dtype = x_nchw.dtype

    # --- glue (single fused input pass under jit): NHWC + spatial pad + cast.
    x_nhwc = jnp.transpose(x_nchw, (0, 2, 3, 1)).astype(compute_dtype)
    xp = jnp.pad(x_nhwc, ((0, 0), (pad_lo, pad_hi), (pad_lo, pad_hi), (0, 0)))

    # weight (2C_out, C_in, K, K) -> (2C_out, K, K, C_in) -> split value/gate:
    # (2, C_out, K*K*C_in), columns ordered (kh, kw, c_in) to match patches.
    w_flat = jnp.transpose(weight, (0, 2, 3, 1)).reshape(2 * out_channels, kk)
    w_split = jnp.stack([w_flat[:out_channels], w_flat[out_channels:]],
                        axis=0).astype(compute_dtype)    # (2, C_out, kk)
    b_split = jnp.stack([bias[:out_channels], bias[out_channels:]],
                        axis=0).astype(jnp.float32).reshape(2, out_channels, 1)

    # --- VMEM budget (explicit; safe on v5e/v6e 128MiB and v7x 64MiB).
    bpe_c = jnp.dtype(compute_dtype).itemsize
    bpe_o = jnp.dtype(out_dtype).itemsize
    est = (2 * hp * wp * c_in * bpe_c        # double-buffered input image block
           + 2 * out_channels * m * bpe_o    # double-buffered output block
           + 2 * out_channels * kk * bpe_c   # resident split weights
           + 2 * out_channels * 4            # bias
           + 6 * m * kk * bpe_c)             # in-kernel patch build temporaries
    vmem_limit = int(min(max(2 * est, 16 * 2 ** 20), 32 * 2 ** 20))

    kernel = functools.partial(_convglu_kernel, h=h, w=w, k=k)

    out = pl.pallas_call(
        kernel,
        out_shape=jax.ShapeDtypeStruct((n, out_channels, m), out_dtype),
        grid_spec=pltpu.PrefetchScalarGridSpec(
            num_scalar_prefetch=0,
            grid=(n,),                                   # >=2 images -> shards across v7x's 2 TCs
            in_specs=[
                # one padded image per step (auto double-buffered by Pallas)
                pl.BlockSpec((1, hp, wp, c_in), lambda i: (i, 0, 0, 0)),
                # split weights / bias: constant block index -> stay resident
                pl.BlockSpec((2, out_channels, kk), lambda i: (0, 0, 0)),
                pl.BlockSpec((2, out_channels, 1), lambda i: (0, 0, 0)),
            ],
            out_specs=pl.BlockSpec((1, out_channels, m), lambda i: (i, 0, 0)),
        ),
        compiler_params=pltpu.CompilerParams(
            dimension_semantics=("parallel",),
            vmem_limit_bytes=vmem_limit),
    )(xp, w_split, b_split)

    # (N, C_out, H*W) is already NCHW order: only a free reshape remains.
    return out.reshape(n, out_channels, h, w)


def _reference(x_nchw, weight, bias, kernel_size, out_channels):
    """Pure-JAX reference (lax conv, NCHW) for correctness checking."""
    k = kernel_size
    total_pad = k - 1
    pad_lo = total_pad // 2
    pad_hi = total_pad - pad_lo
    y = jax.lax.conv_general_dilated(
        x_nchw, weight,
        window_strides=(1, 1),
        padding=((pad_lo, pad_hi), (pad_lo, pad_hi)),
        dimension_numbers=("NCHW", "OIHW", "NCHW"),
    ) + bias[None, :, None, None]
    a = y[:, :out_channels]
    g = y[:, out_channels:]
    return a * jax.nn.sigmoid(g)


if __name__ == "__main__":
    # Module config (ConvGLU(in_channels, out_channels, kernel_size, stride_size=1))
    in_channels = 4
    out_channels = 4
    kernel_size = 3

    # Small deterministic shapes: batch=2, channels=4, spatial=16x16
    N, H, W = 2, 16, 16

    key = jax.random.PRNGKey(0)
    kx, kw_, kb = jax.random.split(key, 3)

    x = jax.random.normal(kx, (N, in_channels, H, W), dtype=jnp.float32)

    # Deterministic parameter init (PyTorch Conv2d weight shape: (2*C_out, C_in, K, K))
    fan_in = in_channels * kernel_size * kernel_size
    bound = 1.0 / float(fan_in) ** 0.5
    weight = jax.random.uniform(
        kw_, (2 * out_channels, in_channels, kernel_size, kernel_size),
        minval=-bound, maxval=bound, dtype=jnp.float32)
    bias = jax.random.uniform(
        kb, (2 * out_channels,), minval=-bound, maxval=bound, dtype=jnp.float32)

    y_ref = _reference(x, weight, bias, kernel_size, out_channels)

    # f32 MXU path: tight numerical check.
    y_f32 = conv_glu_forward(x, weight, bias, kernel_size=kernel_size,
                             out_channels=out_channels,
                             compute_dtype=jnp.float32)
    y_f32 = jax.block_until_ready(y_f32)
    assert y_f32.shape == (N, out_channels, H, W), y_f32.shape
    assert jnp.allclose(y_f32, y_ref, atol=1e-4, rtol=1e-4), "f32 mismatch vs reference"

    # Default bf16 MXU path (f32 accumulate / gating): looser check.
    y_bf16 = conv_glu_forward(x, weight, bias, kernel_size=kernel_size,
                              out_channels=out_channels)
    y_bf16 = jax.block_until_ready(y_bf16)
    assert y_bf16.shape == (N, out_channels, H, W), y_bf16.shape
    assert jnp.allclose(y_bf16, y_ref, atol=3e-2, rtol=3e-2), "bf16 mismatch vs reference"

    print("KERNEL_OK")
</pallas_src>

<mosaic_0001>
module attributes {stable_mosaic.version = 11 : i64} {
  func.func @_convglu_kernel(%arg0: i32, %arg1: memref<1x18x18x4xf32, #tpu.memory_space<vmem>>, %arg2: memref<2x4x36xf32, #tpu.memory_space<vmem>>, %arg3: memref<2x4x1xf32, #tpu.memory_space<vmem>>, %arg4: memref<1x4x256xf32, #tpu.memory_space<vmem>>) attributes {dimension_semantics = [#tpu.dimension_semantics<parallel>], iteration_bounds = array<i64: 2>, scalar_prefetch = 0 : i64, scratch_operands = 0 : i64, tpu.core_type = #tpu.core_type<tc>, window_params = [{transform_indices = @transform_0, window_bounds = array<i64: 1, 18, 18, 4>}, {pipeline_mode = #tpu.pipeline_mode<synchronous>, transform_indices = @transform_1, window_bounds = array<i64: 2, 4, 36>}, {pipeline_mode = #tpu.pipeline_mode<synchronous>, transform_indices = @transform_2, window_bounds = array<i64: 2, 4, 1>}, {transform_indices = @transform_3, window_bounds = array<i64: 1, 4, 256>}]} {
    %c0 = arith.constant 0 : index
    %c0_0 = arith.constant 0 : index
    %c0_1 = arith.constant 0 : index
    %c0_2 = arith.constant 0 : index
    %0 = vector.load %arg1[%c0, %c0_0, %c0_1, %c0_2] : memref<1x18x18x4xf32, #tpu.memory_space<vmem>>, vector<1x18x18x4xf32>
    %1 = vector.shape_cast %0 : vector<1x18x18x4xf32> to vector<18x18x4xf32>
    %2 = vector.extract_strided_slice %1 {offsets = [0, 0, 0], sizes = [16, 16, 4], strides = [1, 1, 1]} : vector<18x18x4xf32> to vector<16x16x4xf32>
    %3 = vector.shape_cast %2 : vector<16x16x4xf32> to vector<256x4xf32>
    %4 = vector.extract_strided_slice %1 {offsets = [0, 1, 0], sizes = [16, 16, 4], strides = [1, 1, 1]} : vector<18x18x4xf32> to vector<16x16x4xf32>
    %5 = vector.shape_cast %4 : vector<16x16x4xf32> to vector<256x4xf32>
    %6 = vector.extract_strided_slice %1 {offsets = [0, 2, 0], sizes = [16, 16, 4], strides = [1, 1, 1]} : vector<18x18x4xf32> to vector<16x16x4xf32>
    %7 = vector.shape_cast %6 : vector<16x16x4xf32> to vector<256x4xf32>
    %8 = vector.extract_strided_slice %1 {offsets = [1, 0, 0], sizes = [16, 16, 4], strides = [1, 1, 1]} : vector<18x18x4xf32> to vector<16x16x4xf32>
    %9 = vector.shape_cast %8 : vector<16x16x4xf32> to vector<256x4xf32>
    %10 = vector.extract_strided_slice %1 {offsets = [1, 1, 0], sizes = [16, 16, 4], strides = [1, 1, 1]} : vector<18x18x4xf32> to vector<16x16x4xf32>
    %11 = vector.shape_cast %10 : vector<16x16x4xf32> to vector<256x4xf32>
    %12 = vector.extract_strided_slice %1 {offsets = [1, 2, 0], sizes = [16, 16, 4], strides = [1, 1, 1]} : vector<18x18x4xf32> to vector<16x16x4xf32>
    %13 = vector.shape_cast %12 : vector<16x16x4xf32> to vector<256x4xf32>
    %14 = vector.extract_strided_slice %1 {offsets = [2, 0, 0], sizes = [16, 16, 4], strides = [1, 1, 1]} : vector<18x18x4xf32> to vector<16x16x4xf32>
    %15 = vector.shape_cast %14 : vector<16x16x4xf32> to vector<256x4xf32>
    %16 = vector.extract_strided_slice %1 {offsets = [2, 1, 0], sizes = [16, 16, 4], strides = [1, 1, 1]} : vector<18x18x4xf32> to vector<16x16x4xf32>
    %17 = vector.shape_cast %16 : vector<16x16x4xf32> to vector<256x4xf32>
    %18 = vector.extract_strided_slice %1 {offsets = [2, 2, 0], sizes = [16, 16, 4], strides = [1, 1, 1]} : vector<18x18x4xf32> to vector<16x16x4xf32>
    %19 = vector.shape_cast %18 : vector<16x16x4xf32> to vector<256x4xf32>
    %20 = tpu.concatenate %3, %5, %7, %9, %11, %13, %15, %17, %19 in 1 : vector<256x4xf32>, vector<256x4xf32>, vector<256x4xf32>, vector<256x4xf32>, vector<256x4xf32>, vector<256x4xf32>, vector<256x4xf32>, vector<256x4xf32>, vector<256x4xf32> -> vector<256x36xf32>
    %c0_3 = arith.constant 0 : index
    %c0_4 = arith.constant 0 : index
    %c0_5 = arith.constant 0 : index
    %21 = vector.load %arg2[%c0_3, %c0_4, %c0_5] : memref<2x4x36xf32, #tpu.memory_space<vmem>>, vector<1x4x36xf32>
    %22 = vector.shape_cast %21 : vector<1x4x36xf32> to vector<4x36xf32>
    %cst = arith.constant dense<0.000000e+00> : vector<4x256xf32>
    %23 = tpu.matmul %22, %20, %cst {dimension_numbers = #tpu.dot_dimension_numbers<[1], [1], [0], [0], [0, 0, 1, 0], [], []>} : vector<4x36xf32>, vector<256x36xf32>, vector<4x256xf32> -> vector<4x256xf32>
    %c0_6 = arith.constant 0 : index
    %c0_7 = arith.constant 0 : index
    %c0_8 = arith.constant 0 : index
    %24 = vector.load %arg3[%c0_6, %c0_7, %c0_8] : memref<2x4x1xf32, #tpu.memory_space<vmem>>, vector<1x4x1xf32>
    %25 = vector.shape_cast %24 : vector<1x4x1xf32> to vector<4x1xf32>
    %26 = vector.broadcast %25 : vector<4x1xf32> to vector<4x256xf32>
    %27 = arith.addf %23, %26 : vector<4x256xf32>
    %c1 = arith.constant 1 : index
    %c0_9 = arith.constant 0 : index
    %c0_10 = arith.constant 0 : index
    %28 = vector.load %arg2[%c1, %c0_9, %c0_10] : memref<2x4x36xf32, #tpu.memory_space<vmem>>, vector<1x4x36xf32>
    %29 = vector.shape_cast %28 : vector<1x4x36xf32> to vector<4x36xf32>
    %cst_11 = arith.constant dense<0.000000e+00> : vector<4x256xf32>
    %30 = tpu.matmul %29, %20, %cst_11 {dimension_numbers = #tpu.dot_dimension_numbers<[1], [1], [0], [0], [0, 0, 1, 0], [], []>} : vector<4x36xf32>, vector<256x36xf32>, vector<4x256xf32> -> vector<4x256xf32>
    %c1_12 = arith.constant 1 : index
    %c0_13 = arith.constant 0 : index
    %c0_14 = arith.constant 0 : index
    %31 = vector.load %arg3[%c1_12, %c0_13, %c0_14] : memref<2x4x1xf32, #tpu.memory_space<vmem>>, vector<1x4x1xf32>
    %32 = vector.shape_cast %31 : vector<1x4x1xf32> to vector<4x1xf32>
    %33 = vector.broadcast %32 : vector<4x1xf32> to vector<4x256xf32>
    %34 = arith.addf %30, %33 : vector<4x256xf32>
    %35 = arith.negf %34 : vector<4x256xf32>
    %36 = math.exp %35 : vector<4x256xf32>
    %cst_15 = arith.constant 1.000000e+00 : f32
    %37 = vector.broadcast %cst_15 : f32 to vector<4x256xf32>
    %38 = arith.addf %37, %36 : vector<4x256xf32>
    %39 = arith.divf %37, %38 : vector<4x256xf32>
    %40 = arith.mulf %27, %39 : vector<4x256xf32>
    %c0_16 = arith.constant 0 : index
    %c0_17 = arith.constant 0 : index
    %c0_18 = arith.constant 0 : index
    %41 = vector.load %arg4[%c0_16, %c0_17, %c0_18] : memref<1x4x256xf32, #tpu.memory_space<vmem>>, vector<1x4x256xf32>
    %42 = vector.shape_cast %41 : vector<1x4x256xf32> to vector<4x256xf32>
    %43 = vector.shape_cast %40 : vector<4x256xf32> to vector<1x4x256xf32>
    tpu.vector_store %arg4[%c0_16, %c0_17, %c0_18], %43 {strides = array<i32>} : memref<1x4x256xf32, #tpu.memory_space<vmem>>, vector<1x4x256xf32>,
    return
  }
  func.func @transform_0(%arg0: i32) -> (i32, i32, i32, i32) {
    %c0_i32 = arith.constant 0 : i32
    %c0_i32_0 = arith.constant 0 : i32
    %c0_i32_1 = arith.constant 0 : i32
    %c0_i32_2 = arith.constant 0 : i32
    return %arg0, %c0_i32, %c0_i32_0, %c0_i32_1 : i32, i32, i32, i32
  }
  func.func @transform_1(%arg0: i32) -> (i32, i32, i32) {
    %c0_i32 = arith.constant 0 : i32
    %c0_i32_0 = arith.constant 0 : i32
    %c0_i32_1 = arith.constant 0 : i32
    %c0_i32_2 = arith.constant 0 : i32
    return %c0_i32, %c0_i32_0, %c0_i32_1 : i32, i32, i32
  }
  func.func @transform_2(%arg0: i32) -> (i32, i32, i32) {
    %c0_i32 = arith.constant 0 : i32
    %c0_i32_0 = arith.constant 0 : i32
    %c0_i32_1 = arith.constant 0 : i32
    %c0_i32_2 = arith.constant 0 : i32
    return %c0_i32, %c0_i32_0, %c0_i32_1 : i32, i32, i32
  }
  func.func @transform_3(%arg0: i32) -> (i32, i32, i32) {
    %c0_i32 = arith.constant 0 : i32
    %c0_i32_0 = arith.constant 0 : i32
    %c0_i32_1 = arith.constant 0 : i32
    return %arg0, %c0_i32, %c0_i32_0 : i32, i32, i32
  }
}

</mosaic_0001>

<llo_original>
// kernel: conv_glu_forward.1
$region0: #{conv_glu_forward.1}
  #allocation0 [shape = 'u32[]', space=smem, size = 0x4, offset = 0x4, fixed_abs, tag = 'smem constant byte address 0x4 - core index']
  #allocation1 [shape = 'u32[144,128]{1,0:T(1,128)}', space=vmem, size = 0x12000, scoped, tag = 'internal scratch']
  %s0 = inlined_call_operand.vmem [shape: f32[2,18,18,4], index: 0, kind: input, shape index: {}]
  %s1 = inlined_call_operand.vmem [shape: f32[2,4,36], index: 1, kind: input, shape index: {}]
  %s2 = inlined_call_operand.vmem [shape: f32[2,4,1], index: 2, kind: input, shape index: {}]
  %s3 = inlined_call_operand.vmem [shape: f32[2,4,256], index: 3, kind: output, shape index: {}]
  %s4 = sld [smem:[#allocation0]]
  $region45: #{conv_glu_forward.1} parent=0
    _
  %s6 = ssub.s32 1, %s4
  %s7 = scalar_select 0, %s6, %s4
  loop: start=0, step=1, limit=4
  $region2: #{conv_glu_forward.1} parent=0 // loop_pre_header
    _
  $region3: #{conv_glu_forward.1} parent=0 // loop_header
    %s9 = sphi 0, %s13
    %p10 = scmp.ge.s32.totalorder %s9, 4
    %s19 = sphi 0, %s21
    %s22 = sphi 0, %s19
    %s23 = sphi 0, %s22
    %s39 = sphi 0, %s23
    %s43 = sphi 0, %s43
    %s45 = sphi 0, %s43
    %s46 = sphi 0, %s45
    %s60 = sphi 0, %s46
    %s64 = sphi 0, %s64
    %s66 = sphi 0, %s64
    %s67 = sphi 0, %s66
    %s81 = sphi 0, %s67
    %s87 = sphi 0, %s89
    %s90 = sphi 0, %s87
    %s91 = sphi 0, %s90
    %s107 = sphi 0, %s91
  $region4: #{conv_glu_forward.1} parent=0 // loop_header_branch
    %12 = sbr.rel (%p10) target = $region8
  $region5: #{conv_glu_forward.1} parent=0 // loop_body
    %s14 = ssub.s32 %s9, 1
    %s15 = ssub.s32 %s9, 2
    %s16 = sadd.s32 %s9, 1
    %s17 = ssub.s32 %s9, %s16
    %p18 = scmp.eq.s32.totalorder %s17, 0
    %s20 = sadd.s32 %s19, 1
    %s21 = scalar_select %p18, %s19, %s20
    %p24 = pneg %p18
    %p25 = scmp.eq.s32.totalorder %s9, 1
    %p26 = por %p24, %p25
    %p27 = scmp.ne.s32.totalorder %s19, %s22
    %p28 = scmp.eq.s32.totalorder %s9, 0
    %p29 = por %p27, %p28
    %p30 = scmp.ne.s32.totalorder %s19, %s22
    %p31 = scmp.eq.s32.totalorder %s14, 1
    %p32 = por %p30, %p31
    %p33 = scmp.ne.s32.totalorder %s22, %s23
    %p34 = scmp.eq.s32.totalorder %s14, 0
    %p35 = por %p33, %p34
    %p36 = scmp.ne.s32.totalorder %s22, %s23
    %p37 = scmp.eq.s32.totalorder %s15, 1
    %p38 = por %p36, %p37
    %p40 = scmp.ne.s32.totalorder %s23, %s39
    %p41 = scmp.eq.s32.totalorder %s15, 0
    %p42 = por %p40, %p41
    %s44 = sadd.s32 %s43, 1
    %p47 = scmp.eq.s32.totalorder %s9, 1
    %p48 = scmp.ne.s32.totalorder %s43, %s45
    %p49 = scmp.eq.s32.totalorder %s9, 0
    %p50 = por %p48, %p49
    %p51 = scmp.ne.s32.totalorder %s43, %s45
    %p52 = scmp.eq.s32.totalorder %s14, 1
    %p53 = por %p51, %p52
    %p54 = scmp.ne.s32.totalorder %s45, %s46
    %p55 = scmp.eq.s32.totalorder %s14, 0
    %p56 = por %p54, %p55
    %p57 = scmp.ne.s32.totalorder %s45, %s46
    %p58 = scmp.eq.s32.totalorder %s15, 1
    %p59 = por %p57, %p58
    %p61 = scmp.ne.s32.totalorder %s46, %s60
    %p62 = scmp.eq.s32.totalorder %s15, 0
    %p63 = por %p61, %p62
    %s65 = sadd.s32 %s64, 1
    %p68 = scmp.eq.s32.totalorder %s9, 1
    %p69 = scmp.ne.s32.totalorder %s64, %s66
    %p70 = scmp.eq.s32.totalorder %s9, 0
    %p71 = por %p69, %p70
    %p72 = scmp.ne.s32.totalorder %s64, %s66
    %p73 = scmp.eq.s32.totalorder %s14, 1
    %p74 = por %p72, %p73
    %p75 = scmp.ne.s32.totalorder %s66, %s67
    %p76 = scmp.eq.s32.totalorder %s14, 0
    %p77 = por %p75, %p76
    %p78 = scmp.ne.s32.totalorder %s66, %s67
    %p79 = scmp.eq.s32.totalorder %s15, 1
    %p80 = por %p78, %p79
    %p82 = scmp.ne.s32.totalorder %s67, %s81
    %p83 = scmp.eq.s32.totalorder %s15, 0
    %p84 = por %p82, %p83
    %s85 = ssub.s32 %s9, %s16
    %p86 = scmp.eq.s32.totalorder %s85, 0
    %s88 = sadd.s32 %s87, 1
    %s89 = scalar_select %p86, %s87, %s88
    %p92 = pneg %p86
    %p93 = scmp.eq.s32.totalorder %s9, 1
    %p94 = por %p92, %p93
    %p95 = scmp.ne.s32.totalorder %s87, %s90
    %p96 = scmp.eq.s32.totalorder %s9, 0
    %p97 = por %p95, %p96
    %p98 = scmp.ne.s32.totalorder %s87, %s90
    %p99 = scmp.eq.s32.totalorder %s14, 1
    %p100 = por %p98, %p99
    %p101 = scmp.ne.s32.totalorder %s90, %s91
    %p102 = scmp.eq.s32.totalorder %s14, 0
    %p103 = por %p101, %p102
    %p104 = scmp.ne.s32.totalorder %s90, %s91
    %p105 = scmp.eq.s32.totalorder %s15, 1
    %p106 = por %p104, %p105
    %p108 = scmp.ne.s32.totalorder %s91, %s107
    %p109 = scmp.eq.s32.totalorder %s15, 0
    %p110 = por %p108, %p109
    %p111 = scmp.le.s32.totalorder 1, %s9
    %p112 = scmp.lt.s32.totalorder %s9, 3
    %p113 = pnand %p111, %p112
    %p114 = pneg %p113
    // Predicated region
    $region9: #{conv_glu_forward.1} parent=5 // pred_check
      _
    $region10: #{conv_glu_forward.1} parent=5 // pred_check_branch
      %116 = sbr.rel (%p113) target = $region12
    $region11: #{conv_glu_forward.1} parent=5 // pred_region
      %s117 = ssub.s32 %s9, 1
      // Predicated region
      $region13: #{conv_glu_forward.1} parent=11 // pred_check
        %p118 = pneg %p56
      $region14: #{conv_glu_forward.1} parent=11 // pred_check_branch
        %120 = sbr.rel (%p118) target = $region16
      $region15: #{conv_glu_forward.1} parent=11 // pred_region
        _
      $region16: #{conv_glu_forward.1} parent=11 // pred_fallthru
        _
      // Predicated region
      $region17: #{conv_glu_forward.1} parent=11 // pred_check
        %p121 = pneg %p77
      $region18: #{conv_glu_forward.1} parent=11 // pred_check_branch
        %123 = sbr.rel (%p121) target = $region20
      $region19: #{conv_glu_forward.1} parent=11 // pred_region
        _
      $region20: #{conv_glu_forward.1} parent=11 // pred_fallthru
        _
    $region12: #{conv_glu_forward.1} parent=5 // pred_fallthru
      _
    %p124 = scmp.lt.s32.totalorder %s9, 2
    // Predicated region
    $region21: #{conv_glu_forward.1} parent=5 // pred_check
      %p125 = pneg %p124
    $region22: #{conv_glu_forward.1} parent=5 // pred_check_branch
      %127 = sbr.rel (%p125) target = $region24
    $region23: #{conv_glu_forward.1} parent=5 // pred_region
      // Predicated region
      $region25: #{conv_glu_forward.1} parent=23 // pred_check
        %p128 = pneg %p29
      $region26: #{conv_glu_forward.1} parent=23 // pred_check_branch
        %130 = sbr.rel (%p128) target = $region28
      $region27: #{conv_glu_forward.1} parent=23 // pred_region
        %p131 = scmp.lt.s32.totalorder %s9, 1
        %s132 = scalar_select %p131, %s9, 1
        %s133 = smul.addr %s132, 54
        %s134 = smul.addr %s133, 8
        %s135 = scalar_lea.vmem %s0, %s134
      $region28: #{conv_glu_forward.1} parent=23 // pred_fallthru
        _
    $region24: #{conv_glu_forward.1} parent=5 // pred_fallthru
      _
    %p136 = scmp.le.s32.totalorder 1, %s9
    %p137 = scmp.lt.s32.totalorder %s9, 3
    %p138 = pnand %p136, %p137
    %p139 = pneg %p138
    // Predicated region
    $region29: #{conv_glu_forward.1} parent=5 // pred_check
      _
    $region30: #{conv_glu_forward.1} parent=5 // pred_check_branch
      %141 = sbr.rel (%p138) target = $region32
    $region31: #{conv_glu_forward.1} parent=5 // pred_region
      %s142 = ssub.s32 %s9, 1
      %p143 = scmp.lt.s32.totalorder %s14, 1
      %s144 = scalar_select %p143, %s14, 1
      %s145 = smul.addr %s144, 54
      %s146 = smul.addr %s145, 8
      %s147 = scalar_lea.vmem %s0, %s146
      %p148 = pneg %p35
      %p149 = pneg %p32
      %p150 = pneg %p56
      %p151 = pneg %p53
      %p152 = pneg %p77
      %p153 = pneg %p74
      %p154 = pneg %p103
      %p155 = pneg %p100
      %p156 = scmp.lt.s32.totalorder %s14, 1
      %s157 = scalar_select %p156, %s14, 1
      %s158 = smul.addr %s157, 2
      %s159 = smul.addr %s158, 4
      %s160 = scalar_lea.vmem %s3, %s159
      %p161 = scmp.lt.s32.totalorder %s14, 1
      %s162 = scalar_select %p161, %s14, 1
      %s163 = smul.addr %s162, 54
      %s164 = smul.addr %s163, 8
      %s165 = scalar_lea.vmem %s0, %s164
      %p166 = scmp.lt.s32.totalorder %s14, 1
      %s167 = scalar_select %p166, %s14, 1
      %s168 = smul.addr %s167, 2
      %s169 = smul.addr %s168, 4
      %s170 = scalar_lea.vmem %s3, %s169
      %v171 = vld [vmem:[%s165] sm:$0xff]
      %v172 = vld [vmem:[%s165 + $0x8] sm:$0xff]
      %v173 = vld [vmem:[%s165 + $0x10] sm:$0x3]
      %v174 = vld [vmem:[%s165 + $0x18] sm:$0xff]
      %v175 = vld [vmem:[%s165 + $0x20] sm:$0xff]
      %v176 = vld [vmem:[%s165 + $0x28] sm:$0x3]
      %v177 = vld [vmem:[%s165 + $0x30] sm:$0xff]
      %v178 = vld [vmem:[%s165 + $0x38] sm:$0xff]
      %v179 = vld [vmem:[%s165 + $0x40] sm:$0x3]
      %v180 = vld [vmem:[%s165 + $0x48] sm:$0xff]
      %v181 = vld [vmem:[%s165 + $0x50] sm:$0xff]
      %v182 = vld [vmem:[%s165 + $0x58] sm:$0x3]
      %v183 = vld [vmem:[%s165 + $0x60] sm:$0xff]
      %v184 = vld [vmem:[%s165 + $0x68] sm:$0xff]
      %v185 = vld [vmem:[%s165 + $0x70] sm:$0x3]
      %v186 = vld [vmem:[%s165 + $0x78] sm:$0xff]
      %v187 = vld [vmem:[%s165 + $0x80] sm:$0xff]
      %v188 = vld [vmem:[%s165 + $0x88] sm:$0x3]
      %v189 = vld [vmem:[%s165 + $0x90] sm:$0xff]
      %v190 = vld [vmem:[%s165 + $0x98] sm:$0xff]
      %v191 = vld [vmem:[%s165 + $0xa0] sm:$0x3]
      %v192 = vld [vmem:[%s165 + $0xa8] sm:$0xff]
      %v193 = vld [vmem:[%s165 + $0xb0] sm:$0xff]
      %v194 = vld [vmem:[%s165 + $0xb8] sm:$0x3]
      %v195 = vld [vmem:[%s165 + $0xc0] sm:$0xff]
      %v196 = vld [vmem:[%s165 + $0xc8] sm:$0xff]
      %v197 = vld [vmem:[%s165 + $0xd0] sm:$0x3]
      %v198 = vld [vmem:[%s165 + $0xd8] sm:$0xff]
      %v199 = vld [vmem:[%s165 + $0xe0] sm:$0xff]
      %v200 = vld [vmem:[%s165 + $0xe8] sm:$0x3]
      %v201 = vld [vmem:[%s165 + $0xf0] sm:$0xff]
      %v202 = vld [vmem:[%s165 + $0xf8] sm:$0xff]
      %v203 = vld [vmem:[%s165 + $0x100] sm:$0x3]
      %v204 = vld [vmem:[%s165 + $0x108] sm:$0xff]
      %v205 = vld [vmem:[%s165 + $0x110] sm:$0xff]
      %v206 = vld [vmem:[%s165 + $0x118] sm:$0x3]
      %v207 = vld [vmem:[%s165 + $0x120] sm:$0xff]
      %v208 = vld [vmem:[%s165 + $0x128] sm:$0xff]
      %v209 = vld [vmem:[%s165 + $0x130] sm:$0x3]
      %v210 = vld [vmem:[%s165 + $0x138] sm:$0xff]
      %v211 = vld [vmem:[%s165 + $0x140] sm:$0xff]
      %v212 = vld [vmem:[%s165 + $0x148] sm:$0x3]
      %v213 = vld [vmem:[%s165 + $0x150] sm:$0xff]
      %v214 = vld [vmem:[%s165 + $0x158] sm:$0xff]
      %v215 = vld [vmem:[%s165 + $0x160] sm:$0x3]
      %v216 = vld [vmem:[%s165 + $0x168] sm:$0xff]
      %v217 = vld [vmem:[%s165 + $0x170] sm:$0xff]
      %v218 = vld [vmem:[%s165 + $0x178] sm:$0x3]
      %v219 = vld [vmem:[%s165 + $0x180] sm:$0xff]
      %v220 = vld [vmem:[%s165 + $0x188] sm:$0xff]
      %v221 = vld [vmem:[%s165 + $0x190] sm:$0x3]
      %v222 = vld [vmem:[%s165 + $0x198] sm:$0xff]
      %v223 = vld [vmem:[%s165 + $0x1a0] sm:$0xff]
      %v224 = vld [vmem:[%s165 + $0x1a8] sm:$0x3]
      %vm273 = vcmask 1046528
      %v274 = vrot.slane %v171, 1
      %v275 = vrot.slane %v172, 1
      %v276 = vsel %vm273, %v274, %v275
      %v277 = vrot.slane %v173, 1
      %v278 = vsel %vm273, %v275, %v277
      %v279 = vrot.slane %v174, 1
      %v280 = vrot.slane %v175, 1
      %v281 = vsel %vm273, %v279, %v280
      %v282 = vrot.slane %v176, 1
      %v283 = vsel %vm273, %v280, %v282
      %v284 = vrot.slane %v177, 1
      %v285 = vrot.slane %v178, 1
      %v286 = vsel %vm273, %v284, %v285
      %v287 = vrot.slane %v179, 1
      %v288 = vsel %vm273, %v285, %v287
      %v289 = vrot.slane %v180, 1
      %v290 = vrot.slane %v181, 1
      %v291 = vsel %vm273, %v289, %v290
      %v292 = vrot.slane %v182, 1
      %v293 = vsel %vm273, %v290, %v292
      %v294 = vrot.slane %v183, 1
      %v295 = vrot.slane %v184, 1
      %v296 = vsel %vm273, %v294, %v295
      %v297 = vrot.slane %v185, 1
      %v298 = vsel %vm273, %v295, %v297
      %v299 = vrot.slane %v186, 1
      %v300 = vrot.slane %v187, 1
      %v301 = vsel %vm273, %v299, %v300
      %v302 = vrot.slane %v188, 1
      %v303 = vsel %vm273, %v300, %v302
      %v304 = vrot.slane %v189, 1
      %v305 = vrot.slane %v190, 1
      %v306 = vsel %vm273, %v304, %v305
      %v307 = vrot.slane %v191, 1
      %v308 = vsel %vm273, %v305, %v307
      %v309 = vrot.slane %v192, 1
      %v310 = vrot.slane %v193, 1
      %v311 = vsel %vm273, %v309, %v310
      %v312 = vrot.slane %v194, 1
      %v313 = vsel %vm273, %v310, %v312
      %v314 = vrot.slane %v195, 1
      %v315 = vrot.slane %v196, 1
      %v316 = vsel %vm273, %v314, %v315
      %v317 = vrot.slane %v197, 1
      %v318 = vsel %vm273, %v315, %v317
      %v319 = vrot.slane %v198, 1
      %v320 = vrot.slane %v199, 1
      %v321 = vsel %vm273, %v319, %v320
      %v322 = vrot.slane %v200, 1
      %v323 = vsel %vm273, %v320, %v322
      %v324 = vrot.slane %v201, 1
      %v325 = vrot.slane %v202, 1
      %v326 = vsel %vm273, %v324, %v325
      %v327 = vrot.slane %v203, 1
      %v328 = vsel %vm273, %v325, %v327
      %v329 = vrot.slane %v204, 1
      %v330 = vrot.slane %v205, 1
      %v331 = vsel %vm273, %v329, %v330
      %v332 = vrot.slane %v206, 1
      %v333 = vsel %vm273, %v330, %v332
      %v334 = vrot.slane %v207, 1
      %v335 = vrot.slane %v208, 1
      %v336 = vsel %vm273, %v334, %v335
      %v337 = vrot.slane %v209, 1
      %v338 = vsel %vm273, %v335, %v337
      %v339 = vrot.slane %v210, 1
      %v340 = vrot.slane %v211, 1
      %v341 = vsel %vm273, %v339, %v340
      %v342 = vrot.slane %v212, 1
      %v343 = vsel %vm273, %v340, %v342
      %v344 = vrot.slane %v213, 1
      %v345 = vrot.slane %v214, 1
      %v346 = vsel %vm273, %v344, %v345
      %v347 = vrot.slane %v215, 1
      %v348 = vsel %vm273, %v345, %v347
      %v349 = vrot.slane %v216, 1
      %v350 = vrot.slane %v217, 1
      %v351 = vsel %vm273, %v349, %v350
      %v352 = vrot.slane %v218, 1
      %v353 = vsel %vm273, %v350, %v352
      %vm354 = vcmask 1045504
      %v355 = vrot.slane %v171, 2
      %v356 = vrot.slane %v172, 2
      %v357 = vsel %vm354, %v355, %v356
      %v358 = vrot.slane %v173, 2
      %v359 = vsel %vm354, %v356, %v358
      %v360 = vrot.slane %v174, 2
      %v361 = vrot.slane %v175, 2
      %v362 = vsel %vm354, %v360, %v361
      %v363 = vrot.slane %v176, 2
      %v364 = vsel %vm354, %v361, %v363
      %v365 = vrot.slane %v177, 2
      %v366 = vrot.slane %v178, 2
      %v367 = vsel %vm354, %v365, %v366
      %v368 = vrot.slane %v179, 2
      %v369 = vsel %vm354, %v366, %v368
      %v370 = vrot.slane %v180, 2
      %v371 = vrot.slane %v181, 2
      %v372 = vsel %vm354, %v370, %v371
      %v373 = vrot.slane %v182, 2
      %v374 = vsel %vm354, %v371, %v373
      %v375 = vrot.slane %v183, 2
      %v376 = vrot.slane %v184, 2
      %v377 = vsel %vm354, %v375, %v376
      %v378 = vrot.slane %v185, 2
      %v379 = vsel %vm354, %v376, %v378
      %v380 = vrot.slane %v186, 2
      %v381 = vrot.slane %v187, 2
      %v382 = vsel %vm354, %v380, %v381
      %v383 = vrot.slane %v188, 2
      %v384 = vsel %vm354, %v381, %v383
      %v385 = vrot.slane %v189, 2
      %v386 = vrot.slane %v190, 2
      %v387 = vsel %vm354, %v385, %v386
      %v388 = vrot.slane %v191, 2
      %v389 = vsel %vm354, %v386, %v388
      %v390 = vrot.slane %v192, 2
      %v391 = vrot.slane %v193, 2
      %v392 = vsel %vm354, %v390, %v391
      %v393 = vrot.slane %v194, 2
      %v394 = vsel %vm354, %v391, %v393
      %v395 = vrot.slane %v195, 2
      %v396 = vrot.slane %v196, 2
      %v397 = vsel %vm354, %v395, %v396
      %v398 = vrot.slane %v197, 2
      %v399 = vsel %vm354, %v396, %v398
      %v400 = vrot.slane %v198, 2
      %v401 = vrot.slane %v199, 2
      %v402 = vsel %vm354, %v400, %v401
      %v403 = vrot.slane %v200, 2
      %v404 = vsel %vm354, %v401, %v403
      %v405 = vrot.slane %v201, 2
      %v406 = vrot.slane %v202, 2
      %v407 = vsel %vm354, %v405, %v406
      %v408 = vrot.slane %v203, 2
      %v409 = vsel %vm354, %v406, %v408
      %v410 = vrot.slane %v204, 2
      %v411 = vrot.slane %v205, 2
      %v412 = vsel %vm354, %v410, %v411
      %v413 = vrot.slane %v206, 2
      %v414 = vsel %vm354, %v411, %v413
      %v415 = vrot.slane %v207, 2
      %v416 = vrot.slane %v208, 2
      %v417 = vsel %vm354, %v415, %v416
      %v418 = vrot.slane %v209, 2
      %v419 = vsel %vm354, %v416, %v418
      %v420 = vrot.slane %v210, 2
      %v421 = vrot.slane %v211, 2
      %v422 = vsel %vm354, %v420, %v421
      %v423 = vrot.slane %v212, 2
      %v424 = vsel %vm354, %v421, %v423
      %v425 = vrot.slane %v213, 2
      %v426 = vrot.slane %v214, 2
      %v427 = vsel %vm354, %v425, %v426
      %v428 = vrot.slane %v215, 2
      %v429 = vsel %vm354, %v426, %v428
      %v430 = vrot.slane %v216, 2
      %v431 = vrot.slane %v217, 2
      %v432 = vsel %vm354, %v430, %v431
      %v433 = vrot.slane %v218, 2
      %v434 = vsel %vm354, %v431, %v433
      %v438 = vrot.slane %v219, 1
      %v439 = vrot.slane %v220, 1
      %v440 = vsel %vm273, %v438, %v439
      %v441 = vrot.slane %v221, 1
      %v442 = vsel %vm273, %v439, %v441
      %v443 = vrot.slane %v219, 2
      %v444 = vrot.slane %v220, 2
      %v445 = vsel %vm354, %v443, %v444
      %v446 = vrot.slane %v221, 2
      %v447 = vsel %vm354, %v444, %v446
      %v451 = vrot.slane %v222, 1
      %v452 = vrot.slane %v223, 1
      %v453 = vsel %vm273, %v451, %v452
      %v454 = vrot.slane %v224, 1
      %v455 = vsel %vm273, %v452, %v454
      %v456 = vrot.slane %v222, 2
      %v457 = vrot.slane %v223, 2
      %v458 = vsel %vm354, %v456, %v457
      %v459 = vrot.slane %v224, 2
      %v460 = vsel %vm354, %v457, %v459
      %461 = vrot.lane.b32.xlu0 %v276, 4
      %v462 = vpop.permute.xlu0 %461
      %463 = vrot.lane.b32.xlu0 %v278, 4
      %v464 = vpop.permute.xlu0 %463
      %465 = vrot.lane.b32.xlu0 %v281, 4
      %v466 = vpop.permute.xlu0 %465
      %467 = vrot.lane.b32.xlu0 %v283, 4
      %v468 = vpop.permute.xlu0 %467
      %469 = vrot.lane.b32.xlu0 %v286, 4
      %v470 = vpop.permute.xlu0 %469
      %471 = vrot.lane.b32.xlu0 %v288, 4
      %v472 = vpop.permute.xlu0 %471
      %473 = vrot.lane.b32.xlu0 %v291, 4
      %v474 = vpop.permute.xlu0 %473
      %475 = vrot.lane.b32.xlu0 %v293, 4
      %v476 = vpop.permute.xlu0 %475
      %477 = vrot.lane.b32.xlu0 %v296, 4
      %v478 = vpop.permute.xlu0 %477
      %479 = vrot.lane.b32.xlu0 %v298, 4
      %v480 = vpop.permute.xlu0 %479
      %481 = vrot.lane.b32.xlu0 %v301, 4
      %v482 = vpop.permute.xlu0 %481
      %483 = vrot.lane.b32.xlu0 %v303, 4
      %v484 = vpop.permute.xlu0 %483
      %485 = vrot.lane.b32.xlu0 %v306, 4
      %v486 = vpop.permute.xlu0 %485
      %487 = vrot.lane.b32.xlu0 %v308, 4
      %v488 = vpop.permute.xlu0 %487
      %489 = vrot.lane.b32.xlu0 %v311, 4
      %v490 = vpop.permute.xlu0 %489
      %491 = vrot.lane.b32.xlu0 %v313, 4
      %v492 = vpop.permute.xlu0 %491
      %493 = vrot.lane.b32.xlu0 %v316, 4
      %v494 = vpop.permute.xlu0 %493
      %495 = vrot.lane.b32.xlu0 %v318, 4
      %v496 = vpop.permute.xlu0 %495
      %497 = vrot.lane.b32.xlu0 %v321, 4
      %v498 = vpop.permute.xlu0 %497
      %499 = vrot.lane.b32.xlu0 %v323, 4
      %v500 = vpop.permute.xlu0 %499
      %501 = vrot.lane.b32.xlu0 %v326, 4
      %v502 = vpop.permute.xlu0 %501
      %503 = vrot.lane.b32.xlu0 %v328, 4
      %v504 = vpop.permute.xlu0 %503
      %505 = vrot.lane.b32.xlu0 %v331, 4
      %v506 = vpop.permute.xlu0 %505
      %507 = vrot.lane.b32.xlu0 %v333, 4
      %v508 = vpop.permute.xlu0 %507
      %509 = vrot.lane.b32.xlu0 %v336, 4
      %v510 = vpop.permute.xlu0 %509
      %511 = vrot.lane.b32.xlu0 %v338, 4
      %v512 = vpop.permute.xlu0 %511
      %513 = vrot.lane.b32.xlu0 %v341, 4
      %v514 = vpop.permute.xlu0 %513
      %515 = vrot.lane.b32.xlu0 %v343, 4
      %v516 = vpop.permute.xlu0 %515
      %517 = vrot.lane.b32.xlu0 %v346, 4
      %v518 = vpop.permute.xlu0 %517
      %519 = vrot.lane.b32.xlu0 %v348, 4
      %v520 = vpop.permute.xlu0 %519
      %521 = vrot.lane.b32.xlu0 %v351, 4
      %v522 = vpop.permute.xlu0 %521
      %523 = vrot.lane.b32.xlu0 %v353, 4
      %v524 = vpop.permute.xlu0 %523
      %557 = vrot.lane.b32.xlu0 %v357, 8
      %v558 = vpop.permute.xlu0 %557
      %559 = vrot.lane.b32.xlu0 %v359, 8
      %v560 = vpop.permute.xlu0 %559
      %561 = vrot.lane.b32.xlu0 %v362, 8
      %v562 = vpop.permute.xlu0 %561
      %563 = vrot.lane.b32.xlu0 %v364, 8
      %v564 = vpop.permute.xlu0 %563
      %565 = vrot.lane.b32.xlu0 %v367, 8
      %v566 = vpop.permute.xlu0 %565
      %567 = vrot.lane.b32.xlu0 %v369, 8
      %v568 = vpop.permute.xlu0 %567
      %569 = vrot.lane.b32.xlu0 %v372, 8
      %v570 = vpop.permute.xlu0 %569
      %571 = vrot.lane.b32.xlu0 %v374, 8
      %v572 = vpop.permute.xlu0 %571
      %573 = vrot.lane.b32.xlu0 %v377, 8
      %v574 = vpop.permute.xlu0 %573
      %575 = vrot.lane.b32.xlu0 %v379, 8
      %v576 = vpop.permute.xlu0 %575
      %577 = vrot.lane.b32.xlu0 %v382, 8
      %v578 = vpop.permute.xlu0 %577
      %579 = vrot.lane.b32.xlu0 %v384, 8
      %v580 = vpop.permute.xlu0 %579
      %581 = vrot.lane.b32.xlu0 %v387, 8
      %v582 = vpop.permute.xlu0 %581
      %583 = vrot.lane.b32.xlu0 %v389, 8
      %v584 = vpop.permute.xlu0 %583
      %585 = vrot.lane.b32.xlu0 %v392, 8
      %v586 = vpop.permute.xlu0 %585
      %587 = vrot.lane.b32.xlu0 %v394, 8
      %v588 = vpop.permute.xlu0 %587
      %589 = vrot.lane.b32.xlu0 %v397, 8
      %v590 = vpop.permute.xlu0 %589
      %591 = vrot.lane.b32.xlu0 %v399, 8
      %v592 = vpop.permute.xlu0 %591
      %593 = vrot.lane.b32.xlu0 %v402, 8
      %v594 = vpop.permute.xlu0 %593
      %595 = vrot.lane.b32.xlu0 %v404, 8
      %v596 = vpop.permute.xlu0 %595
      %597 = vrot.lane.b32.xlu0 %v407, 8
      %v598 = vpop.permute.xlu0 %597
      %599 = vrot.lane.b32.xlu0 %v409, 8
      %v600 = vpop.permute.xlu0 %599
      %601 = vrot.lane.b32.xlu0 %v412, 8
      %v602 = vpop.permute.xlu0 %601
      %603 = vrot.lane.b32.xlu0 %v414, 8
      %v604 = vpop.permute.xlu0 %603
      %605 = vrot.lane.b32.xlu0 %v417, 8
      %v606 = vpop.permute.xlu0 %605
      %607 = vrot.lane.b32.xlu0 %v419, 8
      %v608 = vpop.permute.xlu0 %607
      %609 = vrot.lane.b32.xlu0 %v422, 8
      %v610 = vpop.permute.xlu0 %609
      %611 = vrot.lane.b32.xlu0 %v424, 8
      %v612 = vpop.permute.xlu0 %611
      %613 = vrot.lane.b32.xlu0 %v427, 8
      %v614 = vpop.permute.xlu0 %613
      %615 = vrot.lane.b32.xlu0 %v429, 8
      %v616 = vpop.permute.xlu0 %615
      %617 = vrot.lane.b32.xlu0 %v432, 8
      %v618 = vpop.permute.xlu0 %617
      %619 = vrot.lane.b32.xlu0 %v434, 8
      %v620 = vpop.permute.xlu0 %619
      %653 = vrot.lane.b32.xlu0 %v174, 12
      %v654 = vpop.permute.xlu0 %653
      %655 = vrot.lane.b32.xlu0 %v175, 12
      %v656 = vpop.permute.xlu0 %655
      %657 = vrot.lane.b32.xlu0 %v177, 12
      %v658 = vpop.permute.xlu0 %657
      %659 = vrot.lane.b32.xlu0 %v178, 12
      %v660 = vpop.permute.xlu0 %659
      %661 = vrot.lane.b32.xlu0 %v180, 12
      %v662 = vpop.permute.xlu0 %661
      %663 = vrot.lane.b32.xlu0 %v181, 12
      %v664 = vpop.permute.xlu0 %663
      %665 = vrot.lane.b32.xlu0 %v183, 12
      %v666 = vpop.permute.xlu0 %665
      %667 = vrot.lane.b32.xlu0 %v184, 12
      %v668 = vpop.permute.xlu0 %667
      %669 = vrot.lane.b32.xlu0 %v186, 12
      %v670 = vpop.permute.xlu0 %669
      %671 = vrot.lane.b32.xlu0 %v187, 12
      %v672 = vpop.permute.xlu0 %671
      %673 = vrot.lane.b32.xlu0 %v189, 12
      %v674 = vpop.permute.xlu0 %673
      %675 = vrot.lane.b32.xlu0 %v190, 12
      %v676 = vpop.permute.xlu0 %675
      %677 = vrot.lane.b32.xlu0 %v192, 12
      %v678 = vpop.permute.xlu0 %677
      %679 = vrot.lane.b32.xlu0 %v193, 12
      %v680 = vpop.permute.xlu0 %679
      %681 = vrot.lane.b32.xlu0 %v195, 12
      %v682 = vpop.permute.xlu0 %681
      %683 = vrot.lane.b32.xlu0 %v196, 12
      %v684 = vpop.permute.xlu0 %683
      %685 = vrot.lane.b32.xlu0 %v198, 12
      %v686 = vpop.permute.xlu0 %685
      %687 = vrot.lane.b32.xlu0 %v199, 12
      %v688 = vpop.permute.xlu0 %687
      %689 = vrot.lane.b32.xlu0 %v201, 12
      %v690 = vpop.permute.xlu0 %689
      %691 = vrot.lane.b32.xlu0 %v202, 12
      %v692 = vpop.permute.xlu0 %691
      %693 = vrot.lane.b32.xlu0 %v204, 12
      %v694 = vpop.permute.xlu0 %693
      %695 = vrot.lane.b32.xlu0 %v205, 12
      %v696 = vpop.permute.xlu0 %695
      %697 = vrot.lane.b32.xlu0 %v207, 12
      %v698 = vpop.permute.xlu0 %697
      %699 = vrot.lane.b32.xlu0 %v208, 12
      %v700 = vpop.permute.xlu0 %699
      %701 = vrot.lane.b32.xlu0 %v210, 12
      %v702 = vpop.permute.xlu0 %701
      %703 = vrot.lane.b32.xlu0 %v211, 12
      %v704 = vpop.permute.xlu0 %703
      %705 = vrot.lane.b32.xlu0 %v213, 12
      %v706 = vpop.permute.xlu0 %705
      %707 = vrot.lane.b32.xlu0 %v214, 12
      %v708 = vpop.permute.xlu0 %707
      %709 = vrot.lane.b32.xlu0 %v216, 12
      %v710 = vpop.permute.xlu0 %709
      %711 = vrot.lane.b32.xlu0 %v217, 12
      %v712 = vpop.permute.xlu0 %711
      %713 = vrot.lane.b32.xlu0 %v219, 12
      %v714 = vpop.permute.xlu0 %713
      %715 = vrot.lane.b32.xlu0 %v220, 12
      %v716 = vpop.permute.xlu0 %715
      %749 = vrot.lane.b32.xlu0 %v281, 16
      %v750 = vpop.permute.xlu0 %749
      %751 = vrot.lane.b32.xlu0 %v283, 16
      %v752 = vpop.permute.xlu0 %751
      %753 = vrot.lane.b32.xlu0 %v286, 16
      %v754 = vpop.permute.xlu0 %753
      %755 = vrot.lane.b32.xlu0 %v288, 16
      %v756 = vpop.permute.xlu0 %755
      %757 = vrot.lane.b32.xlu0 %v291, 16
      %v758 = vpop.permute.xlu0 %757
      %759 = vrot.lane.b32.xlu0 %v293, 16
      %v760 = vpop.permute.xlu0 %759
      %761 = vrot.lane.b32.xlu0 %v296, 16
      %v762 = vpop.permute.xlu0 %761
      %763 = vrot.lane.b32.xlu0 %v298, 16
      %v764 = vpop.permute.xlu0 %763
      %765 = vrot.lane.b32.xlu0 %v301, 16
      %v766 = vpop.permute.xlu0 %765
      %767 = vrot.lane.b32.xlu0 %v303, 16
      %v768 = vpop.permute.xlu0 %767
      %769 = vrot.lane.b32.xlu0 %v306, 16
      %v770 = vpop.permute.xlu0 %769
      %771 = vrot.lane.b32.xlu0 %v308, 16
      %v772 = vpop.permute.xlu0 %771
      %773 = vrot.lane.b32.xlu0 %v311, 16
      %v774 = vpop.permute.xlu0 %773
      %775 = vrot.lane.b32.xlu0 %v313, 16
      %v776 = vpop.permute.xlu0 %775
      %777 = vrot.lane.b32.xlu0 %v316, 16
      %v778 = vpop.permute.xlu0 %777
      %779 = vrot.lane.b32.xlu0 %v318, 16
      %v780 = vpop.permute.xlu0 %779
      %781 = vrot.lane.b32.xlu0 %v321, 16
      %v782 = vpop.permute.xlu0 %781
      %783 = vrot.lane.b32.xlu0 %v323, 16
      %v784 = vpop.permute.xlu0 %783
      %785 = vrot.lane.b32.xlu0 %v326, 16
      %v786 = vpop.permute.xlu0 %785
      %787 = vrot.lane.b32.xlu0 %v328, 16
      %v788 = vpop.permute.xlu0 %787
      %789 = vrot.lane.b32.xlu0 %v331, 16
      %v790 = vpop.permute.xlu0 %789
      %791 = vrot.lane.b32.xlu0 %v333, 16
      %v792 = vpop.permute.xlu0 %791
      %793 = vrot.lane.b32.xlu0 %v336, 16
      %v794 = vpop.permute.xlu0 %793
      %795 = vrot.lane.b32.xlu0 %v338, 16
      %v796 = vpop.permute.xlu0 %795
      %797 = vrot.lane.b32.xlu0 %v341, 16
      %v798 = vpop.permute.xlu0 %797
      %799 = vrot.lane.b32.xlu0 %v343, 16
      %v800 = vpop.permute.xlu0 %799
      %801 = vrot.lane.b32.xlu0 %v346, 16
      %v802 = vpop.permute.xlu0 %801
      %803 = vrot.lane.b32.xlu0 %v348, 16
      %v804 = vpop.permute.xlu0 %803
      %805 = vrot.lane.b32.xlu0 %v351, 16
      %v806 = vpop.permute.xlu0 %805
      %807 = vrot.lane.b32.xlu0 %v353, 16
      %v808 = vpop.permute.xlu0 %807
      %809 = vrot.lane.b32.xlu0 %v440, 16
      %v810 = vpop.permute.xlu0 %809
      %811 = vrot.lane.b32.xlu0 %v442, 16
      %v812 = vpop.permute.xlu0 %811
      %845 = vrot.lane.b32.xlu0 %v362, 20
      %v846 = vpop.permute.xlu0 %845
      %847 = vrot.lane.b32.xlu0 %v364, 20
      %v848 = vpop.permute.xlu0 %847
      %849 = vrot.lane.b32.xlu0 %v367, 20
      %v850 = vpop.permute.xlu0 %849
      %851 = vrot.lane.b32.xlu0 %v369, 20
      %v852 = vpop.permute.xlu0 %851
      %853 = vrot.lane.b32.xlu0 %v372, 20
      %v854 = vpop.permute.xlu0 %853
      %855 = vrot.lane.b32.xlu0 %v374, 20
      %v856 = vpop.permute.xlu0 %855
      %857 = vrot.lane.b32.xlu0 %v377, 20
      %v858 = vpop.permute.xlu0 %857
      %859 = vrot.lane.b32.xlu0 %v379, 20
      %v860 = vpop.permute.xlu0 %859
      %861 = vrot.lane.b32.xlu0 %v382, 20
      %v862 = vpop.permute.xlu0 %861
      %863 = vrot.lane.b32.xlu0 %v384, 20
      %v864 = vpop.permute.xlu0 %863
      %865 = vrot.lane.b32.xlu0 %v387, 20
      %v866 = vpop.permute.xlu0 %865
      %867 = vrot.lane.b32.xlu0 %v389, 20
      %v868 = vpop.permute.xlu0 %867
      %869 = vrot.lane.b32.xlu0 %v392, 20
      %v870 = vpop.permute.xlu0 %869
      %871 = vrot.lane.b32.xlu0 %v394, 20
      %v872 = vpop.permute.xlu0 %871
      %873 = vrot.lane.b32.xlu0 %v397, 20
      %v874 = vpop.permute.xlu0 %873
      %875 = vrot.lane.b32.xlu0 %v399, 20
      %v876 = vpop.permute.xlu0 %875
      %877 = vrot.lane.b32.xlu0 %v402, 20
      %v878 = vpop.permute.xlu0 %877
      %879 = vrot.lane.b32.xlu0 %v404, 20
      %v880 = vpop.permute.xlu0 %879
      %881 = vrot.lane.b32.xlu0 %v407, 20
      %v882 = vpop.permute.xlu0 %881
      %883 = vrot.lane.b32.xlu0 %v409, 20
      %v884 = vpop.permute.xlu0 %883
      %885 = vrot.lane.b32.xlu0 %v412, 20
      %v886 = vpop.permute.xlu0 %885
      %887 = vrot.lane.b32.xlu0 %v414, 20
      %v888 = vpop.permute.xlu0 %887
      %889 = vrot.lane.b32.xlu0 %v417, 20
      %v890 = vpop.permute.xlu0 %889
      %891 = vrot.lane.b32.xlu0 %v419, 20
      %v892 = vpop.permute.xlu0 %891
      %893 = vrot.lane.b32.xlu0 %v422, 20
      %v894 = vpop.permute.xlu0 %893
      %895 = vrot.lane.b32.xlu0 %v424, 20
      %v896 = vpop.permute.xlu0 %895
      %897 = vrot.lane.b32.xlu0 %v427, 20
      %v898 = vpop.permute.xlu0 %897
      %899 = vrot.lane.b32.xlu0 %v429, 20
      %v900 = vpop.permute.xlu0 %899
      %901 = vrot.lane.b32.xlu0 %v432, 20
      %v902 = vpop.permute.xlu0 %901
      %903 = vrot.lane.b32.xlu0 %v434, 20
      %v904 = vpop.permute.xlu0 %903
      %905 = vrot.lane.b32.xlu0 %v445, 20
      %v906 = vpop.permute.xlu0 %905
      %907 = vrot.lane.b32.xlu0 %v447, 20
      %v908 = vpop.permute.xlu0 %907
      %941 = vrot.lane.b32.xlu0 %v177, 24
      %v942 = vpop.permute.xlu0 %941
      %943 = vrot.lane.b32.xlu0 %v178, 24
      %v944 = vpop.permute.xlu0 %943
      %945 = vrot.lane.b32.xlu0 %v180, 24
      %v946 = vpop.permute.xlu0 %945
      %947 = vrot.lane.b32.xlu0 %v181, 24
      %v948 = vpop.permute.xlu0 %947
      %949 = vrot.lane.b32.xlu0 %v183, 24
      %v950 = vpop.permute.xlu0 %949
      %951 = vrot.lane.b32.xlu0 %v184, 24
      %v952 = vpop.permute.xlu0 %951
      %953 = vrot.lane.b32.xlu0 %v186, 24
      %v954 = vpop.permute.xlu0 %953
      %955 = vrot.lane.b32.xlu0 %v187, 24
      %v956 = vpop.permute.xlu0 %955
      %957 = vrot.lane.b32.xlu0 %v189, 24
      %v958 = vpop.permute.xlu0 %957
      %959 = vrot.lane.b32.xlu0 %v190, 24
      %v960 = vpop.permute.xlu0 %959
      %961 = vrot.lane.b32.xlu0 %v192, 24
      %v962 = vpop.permute.xlu0 %961
      %963 = vrot.lane.b32.xlu0 %v193, 24
      %v964 = vpop.permute.xlu0 %963
      %965 = vrot.lane.b32.xlu0 %v195, 24
      %v966 = vpop.permute.xlu0 %965
      %967 = vrot.lane.b32.xlu0 %v196, 24
      %v968 = vpop.permute.xlu0 %967
      %969 = vrot.lane.b32.xlu0 %v198, 24
      %v970 = vpop.permute.xlu0 %969
      %971 = vrot.lane.b32.xlu0 %v199, 24
      %v972 = vpop.permute.xlu0 %971
      %973 = vrot.lane.b32.xlu0 %v201, 24
      %v974 = vpop.permute.xlu0 %973
      %975 = vrot.lane.b32.xlu0 %v202, 24
      %v976 = vpop.permute.xlu0 %975
      %977 = vrot.lane.b32.xlu0 %v204, 24
      %v978 = vpop.permute.xlu0 %977
      %979 = vrot.lane.b32.xlu0 %v205, 24
      %v980 = vpop.permute.xlu0 %979
      %981 = vrot.lane.b32.xlu0 %v207, 24
      %v982 = vpop.permute.xlu0 %981
      %983 = vrot.lane.b32.xlu0 %v208, 24
      %v984 = vpop.permute.xlu0 %983
      %985 = vrot.lane.b32.xlu0 %v210, 24
      %v986 = vpop.permute.xlu0 %985
      %987 = vrot.lane.b32.xlu0 %v211, 24
      %v988 = vpop.permute.xlu0 %987
      %989 = vrot.lane.b32.xlu0 %v213, 24
      %v990 = vpop.permute.xlu0 %989
      %991 = vrot.lane.b32.xlu0 %v214, 24
      %v992 = vpop.permute.xlu0 %991
      %993 = vrot.lane.b32.xlu0 %v216, 24
      %v994 = vpop.permute.xlu0 %993
      %995 = vrot.lane.b32.xlu0 %v217, 24
      %v996 = vpop.permute.xlu0 %995
      %997 = vrot.lane.b32.xlu0 %v219, 24
      %v998 = vpop.permute.xlu0 %997
      %999 = vrot.lane.b32.xlu0 %v220, 24
      %v1000 = vpop.permute.xlu0 %999
      %1001 = vrot.lane.b32.xlu0 %v222, 24
      %v1002 = vpop.permute.xlu0 %1001
      %1003 = vrot.lane.b32.xlu0 %v223, 24
      %v1004 = vpop.permute.xlu0 %1003
      %1037 = vrot.lane.b32.xlu0 %v286, 28
      %v1038 = vpop.permute.xlu0 %1037
      %1039 = vrot.lane.b32.xlu0 %v288, 28
      %v1040 = vpop.permute.xlu0 %1039
      %1041 = vrot.lane.b32.xlu0 %v291, 28
      %v1042 = vpop.permute.xlu0 %1041
      %1043 = vrot.lane.b32.xlu0 %v293, 28
      %v1044 = vpop.permute.xlu0 %1043
      %1045 = vrot.lane.b32.xlu0 %v296, 28
      %v1046 = vpop.permute.xlu0 %1045
      %1047 = vrot.lane.b32.xlu0 %v298, 28
      %v1048 = vpop.permute.xlu0 %1047
      %1049 = vrot.lane.b32.xlu0 %v301, 28
      %v1050 = vpop.permute.xlu0 %1049
      %1051 = vrot.lane.b32.xlu0 %v303, 28
      %v1052 = vpop.permute.xlu0 %1051
      %1053 = vrot.lane.b32.xlu0 %v306, 28
      %v1054 = vpop.permute.xlu0 %1053
      %1055 = vrot.lane.b32.xlu0 %v308, 28
      %v1056 = vpop.permute.xlu0 %1055
      %1057 = vrot.lane.b32.xlu0 %v311, 28
      %v1058 = vpop.permute.xlu0 %1057
      %1059 = vrot.lane.b32.xlu0 %v313, 28
      %v1060 = vpop.permute.xlu0 %1059
      %1061 = vrot.lane.b32.xlu0 %v316, 28
      %v1062 = vpop.permute.xlu0 %1061
      %1063 = vrot.lane.b32.xlu0 %v318, 28
      %v1064 = vpop.permute.xlu0 %1063
      %1065 = vrot.lane.b32.xlu0 %v321, 28
      %v1066 = vpop.permute.xlu0 %1065
      %1067 = vrot.lane.b32.xlu0 %v323, 28
      %v1068 = vpop.permute.xlu0 %1067
      %1069 = vrot.lane.b32.xlu0 %v326, 28
      %v1070 = vpop.permute.xlu0 %1069
      %1071 = vrot.lane.b32.xlu0 %v328, 28
      %v1072 = vpop.permute.xlu0 %1071
      %1073 = vrot.lane.b32.xlu0 %v331, 28
      %v1074 = vpop.permute.xlu0 %1073
      %1075 = vrot.lane.b32.xlu0 %v333, 28
      %v1076 = vpop.permute.xlu0 %1075
      %1077 = vrot.lane.b32.xlu0 %v336, 28
      %v1078 = vpop.permute.xlu0 %1077
      %1079 = vrot.lane.b32.xlu0 %v338, 28
      %v1080 = vpop.permute.xlu0 %1079
      %1081 = vrot.lane.b32.xlu0 %v341, 28
      %v1082 = vpop.permute.xlu0 %1081
      %1083 = vrot.lane.b32.xlu0 %v343, 28
      %v1084 = vpop.permute.xlu0 %1083
      %1085 = vrot.lane.b32.xlu0 %v346, 28
      %v1086 = vpop.permute.xlu0 %1085
      %1087 = vrot.lane.b32.xlu0 %v348, 28
      %v1088 = vpop.permute.xlu0 %1087
      %1089 = vrot.lane.b32.xlu0 %v351, 28
      %v1090 = vpop.permute.xlu0 %1089
      %1091 = vrot.lane.b32.xlu0 %v353, 28
      %v1092 = vpop.permute.xlu0 %1091
      %1093 = vrot.lane.b32.xlu0 %v440, 28
      %v1094 = vpop.permute.xlu0 %1093
      %1095 = vrot.lane.b32.xlu0 %v442, 28
      %v1096 = vpop.permute.xlu0 %1095
      %1097 = vrot.lane.b32.xlu0 %v453, 28
      %v1098 = vpop.permute.xlu0 %1097
      %1099 = vrot.lane.b32.xlu0 %v455, 28
      %v1100 = vpop.permute.xlu0 %1099
      %1133 = vrot.lane.b32.xlu0 %v367, 32
      %v1134 = vpop.permute.xlu0 %1133
      %1135 = vrot.lane.b32.xlu0 %v369, 32
      %v1136 = vpop.permute.xlu0 %1135
      %1137 = vrot.lane.b32.xlu0 %v372, 32
      %v1138 = vpop.permute.xlu0 %1137
      %1139 = vrot.lane.b32.xlu0 %v374, 32
      %v1140 = vpop.permute.xlu0 %1139
      %1141 = vrot.lane.b32.xlu0 %v377, 32
      %v1142 = vpop.permute.xlu0 %1141
      %1143 = vrot.lane.b32.xlu0 %v379, 32
      %v1144 = vpop.permute.xlu0 %1143
      %1145 = vrot.lane.b32.xlu0 %v382, 32
      %v1146 = vpop.permute.xlu0 %1145
      %1147 = vrot.lane.b32.xlu0 %v384, 32
      %v1148 = vpop.permute.xlu0 %1147
      %1149 = vrot.lane.b32.xlu0 %v387, 32
      %v1150 = vpop.permute.xlu0 %1149
      %1151 = vrot.lane.b32.xlu0 %v389, 32
      %v1152 = vpop.permute.xlu0 %1151
      %1153 = vrot.lane.b32.xlu0 %v392, 32
      %v1154 = vpop.permute.xlu0 %1153
      %1155 = vrot.lane.b32.xlu0 %v394, 32
      %v1156 = vpop.permute.xlu0 %1155
      %1157 = vrot.lane.b32.xlu0 %v397, 32
      %v1158 = vpop.permute.xlu0 %1157
      %1159 = vrot.lane.b32.xlu0 %v399, 32
      %v1160 = vpop.permute.xlu0 %1159
      %1161 = vrot.lane.b32.xlu0 %v402, 32
      %v1162 = vpop.permute.xlu0 %1161
      %1163 = vrot.lane.b32.xlu0 %v404, 32
      %v1164 = vpop.permute.xlu0 %1163
      %1165 = vrot.lane.b32.xlu0 %v407, 32
      %v1166 = vpop.permute.xlu0 %1165
      %1167 = vrot.lane.b32.xlu0 %v409, 32
      %v1168 = vpop.permute.xlu0 %1167
      %1169 = vrot.lane.b32.xlu0 %v412, 32
      %v1170 = vpop.permute.xlu0 %1169
      %1171 = vrot.lane.b32.xlu0 %v414, 32
      %v1172 = vpop.permute.xlu0 %1171
      %1173 = vrot.lane.b32.xlu0 %v417, 32
      %v1174 = vpop.permute.xlu0 %1173
      %1175 = vrot.lane.b32.xlu0 %v419, 32
      %v1176 = vpop.permute.xlu0 %1175
      %1177 = vrot.lane.b32.xlu0 %v422, 32
      %v1178 = vpop.permute.xlu0 %1177
      %1179 = vrot.lane.b32.xlu0 %v424, 32
      %v1180 = vpop.permute.xlu0 %1179
      %1181 = vrot.lane.b32.xlu0 %v427, 32
      %v1182 = vpop.permute.xlu0 %1181
      %1183 = vrot.lane.b32.xlu0 %v429, 32
      %v1184 = vpop.permute.xlu0 %1183
      %1185 = vrot.lane.b32.xlu0 %v432, 32
      %v1186 = vpop.permute.xlu0 %1185
      %1187 = vrot.lane.b32.xlu0 %v434, 32
      %v1188 = vpop.permute.xlu0 %1187
      %1189 = vrot.lane.b32.xlu0 %v445, 32
      %v1190 = vpop.permute.xlu0 %1189
      %1191 = vrot.lane.b32.xlu0 %v447, 32
      %v1192 = vpop.permute.xlu0 %1191
      %1193 = vrot.lane.b32.xlu0 %v458, 32
      %v1194 = vpop.permute.xlu0 %1193
      %1195 = vrot.lane.b32.xlu0 %v460, 32
      %v1196 = vpop.permute.xlu0 %1195
      %vm1229 = vcmask 31744
      %v1230 = vsel %vm1229, %v171, %v462
      %v1231 = vsel %vm1229, %v172, %v464
      %v1232 = vsel %vm1229, %v174, %v466
      %v1233 = vsel %vm1229, %v175, %v468
      %v1234 = vsel %vm1229, %v177, %v470
      %v1235 = vsel %vm1229, %v178, %v472
      %v1236 = vsel %vm1229, %v180, %v474
      %v1237 = vsel %vm1229, %v181, %v476
      %v1238 = vsel %vm1229, %v183, %v478
      %v1239 = vsel %vm1229, %v184, %v480
      %v1240 = vsel %vm1229, %v186, %v482
      %v1241 = vsel %vm1229, %v187, %v484
      %v1242 = vsel %vm1229, %v189, %v486
      %v1243 = vsel %vm1229, %v190, %v488
      %v1244 = vsel %vm1229, %v192, %v490
      %v1245 = vsel %vm1229, %v193, %v492
      %v1246 = vsel %vm1229, %v195, %v494
      %v1247 = vsel %vm1229, %v196, %v496
      %v1248 = vsel %vm1229, %v198, %v498
      %v1249 = vsel %vm1229, %v199, %v500
      %v1250 = vsel %vm1229, %v201, %v502
      %v1251 = vsel %vm1229, %v202, %v504
      %v1252 = vsel %vm1229, %v204, %v506
      %v1253 = vsel %vm1229, %v205, %v508
      %v1254 = vsel %vm1229, %v207, %v510
      %v1255 = vsel %vm1229, %v208, %v512
      %v1256 = vsel %vm1229, %v210, %v514
      %v1257 = vsel %vm1229, %v211, %v516
      %v1258 = vsel %vm1229, %v213, %v518
      %v1259 = vsel %vm1229, %v214, %v520
      %v1260 = vsel %vm1229, %v216, %v522
      %v1261 = vsel %vm1229, %v217, %v524
      %vm1262 = vcmask 64512
      %v1263 = vsel %vm1262, %v1230, %v558
      %v1264 = vsel %vm1262, %v1231, %v560
      %v1265 = vsel %vm1262, %v1232, %v562
      %v1266 = vsel %vm1262, %v1233, %v564
      %v1267 = vsel %vm1262, %v1234, %v566
      %v1268 = vsel %vm1262, %v1235, %v568
      %v1269 = vsel %vm1262, %v1236, %v570
      %v1270 = vsel %vm1262, %v1237, %v572
      %v1271 = vsel %vm1262, %v1238, %v574
      %v1272 = vsel %vm1262, %v1239, %v576
      %v1273 = vsel %vm1262, %v1240, %v578
      %v1274 = vsel %vm1262, %v1241, %v580
      %v1275 = vsel %vm1262, %v1242, %v582
      %v1276 = vsel %vm1262, %v1243, %v584
      %v1277 = vsel %vm1262, %v1244, %v586
      %v1278 = vsel %vm1262, %v1245, %v588
      %v1279 = vsel %vm1262, %v1246, %v590
      %v1280 = vsel %vm1262, %v1247, %v592
      %v1281 = vsel %vm1262, %v1248, %v594
      %v1282 = vsel %vm1262, %v1249, %v596
      %v1283 = vsel %vm1262, %v1250, %v598
      %v1284 = vsel %vm1262, %v1251, %v600
      %v1285 = vsel %vm1262, %v1252, %v602
      %v1286 = vsel %vm1262, %v1253, %v604
      %v1287 = vsel %vm1262, %v1254, %v606
      %v1288 = vsel %vm1262, %v1255, %v608
      %v1289 = vsel %vm1262, %v1256, %v610
      %v1290 = vsel %vm1262, %v1257, %v612
      %v1291 = vsel %vm1262, %v1258, %v614
      %v1292 = vsel %vm1262, %v1259, %v616
      %v1293 = vsel %vm1262, %v1260, %v618
      %v1294 = vsel %vm1262, %v1261, %v620
      %vm1295 = vcmask 97280
      %v1296 = vsel %vm1295, %v1263, %v654
      %v1297 = vsel %vm1295, %v1264, %v656
      %v1298 = vsel %vm1295, %v1265, %v658
      %v1299 = vsel %vm1295, %v1266, %v660
      %v1300 = vsel %vm1295, %v1267, %v662
      %v1301 = vsel %vm1295, %v1268, %v664
      %v1302 = vsel %vm1295, %v1269, %v666
      %v1303 = vsel %vm1295, %v1270, %v668
      %v1304 = vsel %vm1295, %v1271, %v670
      %v1305 = vsel %vm1295, %v1272, %v672
      %v1306 = vsel %vm1295, %v1273, %v674
      %v1307 = vsel %vm1295, %v1274, %v676
      %v1308 = vsel %vm1295, %v1275, %v678
      %v1309 = vsel %vm1295, %v1276, %v680
      %v1310 = vsel %vm1295, %v1277, %v682
      %v1311 = vsel %vm1295, %v1278, %v684
      %v1312 = vsel %vm1295, %v1279, %v686
      %v1313 = vsel %vm1295, %v1280, %v688
      %v1314 = vsel %vm1295, %v1281, %v690
      %v1315 = vsel %vm1295, %v1282, %v692
      %v1316 = vsel %vm1295, %v1283, %v694
      %v1317 = vsel %vm1295, %v1284, %v696
      %v1318 = vsel %vm1295, %v1285, %v698
      %v1319 = vsel %vm1295, %v1286, %v700
      %v1320 = vsel %vm1295, %v1287, %v702
      %v1321 = vsel %vm1295, %v1288, %v704
      %v1322 = vsel %vm1295, %v1289, %v706
      %v1323 = vsel %vm1295, %v1290, %v708
      %v1324 = vsel %vm1295, %v1291, %v710
      %v1325 = vsel %vm1295, %v1292, %v712
      %v1326 = vsel %vm1295, %v1293, %v714
      %v1327 = vsel %vm1295, %v1294, %v716
      %vm1328 = vcmask 130048
      %v1329 = vsel %vm1328, %v1296, %v750
      %v1330 = vsel %vm1328, %v1297, %v752
      %v1331 = vsel %vm1328, %v1298, %v754
      %v1332 = vsel %vm1328, %v1299, %v756
      %v1333 = vsel %vm1328, %v1300, %v758
      %v1334 = vsel %vm1328, %v1301, %v760
      %v1335 = vsel %vm1328, %v1302, %v762
      %v1336 = vsel %vm1328, %v1303, %v764
      %v1337 = vsel %vm1328, %v1304, %v766
      %v1338 = vsel %vm1328, %v1305, %v768
      %v1339 = vsel %vm1328, %v1306, %v770
      %v1340 = vsel %vm1328, %v1307, %v772
      %v1341 = vsel %vm1328, %v1308, %v774
      %v1342 = vsel %vm1328, %v1309, %v776
      %v1343 = vsel %vm1328, %v1310, %v778
      %v1344 = vsel %vm1328, %v1311, %v780
      %v1345 = vsel %vm1328, %v1312, %v782
      %v1346 = vsel %vm1328, %v1313, %v784
      %v1347 = vsel %vm1328, %v1314, %v786
      %v1348 = vsel %vm1328, %v1315, %v788
      %v1349 = vsel %vm1328, %v1316, %v790
      %v1350 = vsel %vm1328, %v1317, %v792
      %v1351 = vsel %vm1328, %v1318, %v794
      %v1352 = vsel %vm1328, %v1319, %v796
      %v1353 = vsel %vm1328, %v1320, %v798
      %v1354 = vsel %vm1328, %v1321, %v800
      %v1355 = vsel %vm1328, %v1322, %v802
      %v1356 = vsel %vm1328, %v1323, %v804
      %v1357 = vsel %vm1328, %v1324, %v806
      %v1358 = vsel %vm1328, %v1325, %v808
      %v1359 = vsel %vm1328, %v1326, %v810
      %v1360 = vsel %vm1328, %v1327, %v812
      %vm1361 = vcmask 162816
      %v1362 = vsel %vm1361, %v1329, %v846
      %v1363 = vsel %vm1361, %v1330, %v848
      %v1364 = vsel %vm1361, %v1331, %v850
      %v1365 = vsel %vm1361, %v1332, %v852
      %v1366 = vsel %vm1361, %v1333, %v854
      %v1367 = vsel %vm1361, %v1334, %v856
      %v1368 = vsel %vm1361, %v1335, %v858
      %v1369 = vsel %vm1361, %v1336, %v860
      %v1370 = vsel %vm1361, %v1337, %v862
      %v1371 = vsel %vm1361, %v1338, %v864
      %v1372 = vsel %vm1361, %v1339, %v866
      %v1373 = vsel %vm1361, %v1340, %v868
      %v1374 = vsel %vm1361, %v1341, %v870
      %v1375 = vsel %vm1361, %v1342, %v872
      %v1376 = vsel %vm1361, %v1343, %v874
      %v1377 = vsel %vm1361, %v1344, %v876
      %v1378 = vsel %vm1361, %v1345, %v878
      %v1379 = vsel %vm1361, %v1346, %v880
      %v1380 = vsel %vm1361, %v1347, %v882
      %v1381 = vsel %vm1361, %v1348, %v884
      %v1382 = vsel %vm1361, %v1349, %v886
      %v1383 = vsel %vm1361, %v1350, %v888
      %v1384 = vsel %vm1361, %v1351, %v890
      %v1385 = vsel %vm1361, %v1352, %v892
      %v1386 = vsel %vm1361, %v1353, %v894
      %v1387 = vsel %vm1361, %v1354, %v896
      %v1388 = vsel %vm1361, %v1355, %v898
      %v1389 = vsel %vm1361, %v1356, %v900
      %v1390 = vsel %vm1361, %v1357, %v902
      %v1391 = vsel %vm1361, %v1358, %v904
      %v1392 = vsel %vm1361, %v1359, %v906
      %v1393 = vsel %vm1361, %v1360, %v908
      %vm1394 = vcmask 195584
      %v1395 = vsel %vm1394, %v1362, %v942
      %v1396 = vsel %vm1394, %v1363, %v944
      %v1397 = vsel %vm1394, %v1364, %v946
      %v1398 = vsel %vm1394, %v1365, %v948
      %v1399 = vsel %vm1394, %v1366, %v950
      %v1400 = vsel %vm1394, %v1367, %v952
      %v1401 = vsel %vm1394, %v1368, %v954
      %v1402 = vsel %vm1394, %v1369, %v956
      %v1403 = vsel %vm1394, %v1370, %v958
      %v1404 = vsel %vm1394, %v1371, %v960
      %v1405 = vsel %vm1394, %v1372, %v962
      %v1406 = vsel %vm1394, %v1373, %v964
      %v1407 = vsel %vm1394, %v1374, %v966
      %v1408 = vsel %vm1394, %v1375, %v968
      %v1409 = vsel %vm1394, %v1376, %v970
      %v1410 = vsel %vm1394, %v1377, %v972
      %v1411 = vsel %vm1394, %v1378, %v974
      %v1412 = vsel %vm1394, %v1379, %v976
      %v1413 = vsel %vm1394, %v1380, %v978
      %v1414 = vsel %vm1394, %v1381, %v980
      %v1415 = vsel %vm1394, %v1382, %v982
      %v1416 = vsel %vm1394, %v1383, %v984
      %v1417 = vsel %vm1394, %v1384, %v986
      %v1418 = vsel %vm1394, %v1385, %v988
      %v1419 = vsel %vm1394, %v1386, %v990
      %v1420 = vsel %vm1394, %v1387, %v992
      %v1421 = vsel %vm1394, %v1388, %v994
      %v1422 = vsel %vm1394, %v1389, %v996
      %v1423 = vsel %vm1394, %v1390, %v998
      %v1424 = vsel %vm1394, %v1391, %v1000
      %v1425 = vsel %vm1394, %v1392, %v1002
      %v1426 = vsel %vm1394, %v1393, %v1004
      %vm1427 = vcmask 228352
      %v1428 = vsel %vm1427, %v1395, %v1038
      %v1429 = vsel %vm1427, %v1396, %v1040
      %v1430 = vsel %vm1427, %v1397, %v1042
      %v1431 = vsel %vm1427, %v1398, %v1044
      %v1432 = vsel %vm1427, %v1399, %v1046
      %v1433 = vsel %vm1427, %v1400, %v1048
      %v1434 = vsel %vm1427, %v1401, %v1050
      %v1435 = vsel %vm1427, %v1402, %v1052
      %v1436 = vsel %vm1427, %v1403, %v1054
      %v1437 = vsel %vm1427, %v1404, %v1056
      %v1438 = vsel %vm1427, %v1405, %v1058
      %v1439 = vsel %vm1427, %v1406, %v1060
      %v1440 = vsel %vm1427, %v1407, %v1062
      %v1441 = vsel %vm1427, %v1408, %v1064
      %v1442 = vsel %vm1427, %v1409, %v1066
      %v1443 = vsel %vm1427, %v1410, %v1068
      %v1444 = vsel %vm1427, %v1411, %v1070
      %v1445 = vsel %vm1427, %v1412, %v1072
      %v1446 = vsel %vm1427, %v1413, %v1074
      %v1447 = vsel %vm1427, %v1414, %v1076
      %v1448 = vsel %vm1427, %v1415, %v1078
      %v1449 = vsel %vm1427, %v1416, %v1080
      %v1450 = vsel %vm1427, %v1417, %v1082
      %v1451 = vsel %vm1427, %v1418, %v1084
      %v1452 = vsel %vm1427, %v1419, %v1086
      %v1453 = vsel %vm1427, %v1420, %v1088
      %v1454 = vsel %vm1427, %v1421, %v1090
      %v1455 = vsel %vm1427, %v1422, %v1092
      %v1456 = vsel %vm1427, %v1423, %v1094
      %v1457 = vsel %vm1427, %v1424, %v1096
      %v1458 = vsel %vm1427, %v1425, %v1098
      %v1459 = vsel %vm1427, %v1426, %v1100
      %vm1460 = vcmask 261120
      %v1461 = vsel %vm1460, %v1428, %v1134
      %v1462 = vsel %vm1460, %v1429, %v1136
      %v1463 = vsel %vm1460, %v1430, %v1138
      %v1464 = vsel %vm1460, %v1431, %v1140
      %v1465 = vsel %vm1460, %v1432, %v1142
      %v1466 = vsel %vm1460, %v1433, %v1144
      %v1467 = vsel %vm1460, %v1434, %v1146
      %v1468 = vsel %vm1460, %v1435, %v1148
      %v1469 = vsel %vm1460, %v1436, %v1150
      %v1470 = vsel %vm1460, %v1437, %v1152
      %v1471 = vsel %vm1460, %v1438, %v1154
      %v1472 = vsel %vm1460, %v1439, %v1156
      %v1473 = vsel %vm1460, %v1440, %v1158
      %v1474 = vsel %vm1460, %v1441, %v1160
      %v1475 = vsel %vm1460, %v1442, %v1162
      %v1476 = vsel %vm1460, %v1443, %v1164
      %v1477 = vsel %vm1460, %v1444, %v1166
      %v1478 = vsel %vm1460, %v1445, %v1168
      %v1479 = vsel %vm1460, %v1446, %v1170
      %v1480 = vsel %vm1460, %v1447, %v1172
      %v1481 = vsel %vm1460, %v1448, %v1174
      %v1482 = vsel %vm1460, %v1449, %v1176
      %v1483 = vsel %vm1460, %v1450, %v1178
      %v1484 = vsel %vm1460, %v1451, %v1180
      %v1485 = vsel %vm1460, %v1452, %v1182
      %v1486 = vsel %vm1460, %v1453, %v1184
      %v1487 = vsel %vm1460, %v1454, %v1186
      %v1488 = vsel %vm1460, %v1455, %v1188
      %v1489 = vsel %vm1460, %v1456, %v1190
      %v1490 = vsel %vm1460, %v1457, %v1192
      %v1491 = vsel %vm1460, %v1458, %v1194
      %v1492 = vsel %vm1460, %v1459, %v1196
      %v1493 = vld [vmem:[%s1] sm:$0xf]
      %v1494 = vld [vmem:[%s2] sm:$0xf]
      %1496 = vset.pattern.permute.xlu0 0
      %1497 = vperm.xlu0 %1496, %v1494
      %v1498 = vpop.permute.xlu0 %1497
      %vm1500 = vcmask 293888
      %v1502 = vsel %vm1500, %v1493, 0
      %v1505 = vsel %vm1500, %v1461, 0
      %v1508 = vsel %vm1500, %v1462, 0
      %v1511 = vsel %vm1500, %v1463, 0
      %v1514 = vsel %vm1500, %v1464, 0
      %v1517 = vsel %vm1500, %v1465, 0
      %v1520 = vsel %vm1500, %v1466, 0
      %v1523 = vsel %vm1500, %v1467, 0
      %v1526 = vsel %vm1500, %v1468, 0
      %v1529 = vsel %vm1500, %v1469, 0
      %v1532 = vsel %vm1500, %v1470, 0
      %v1535 = vsel %vm1500, %v1471, 0
      %v1538 = vsel %vm1500, %v1472, 0
      %v1541 = vsel %vm1500, %v1473, 0
      %v1544 = vsel %vm1500, %v1474, 0
      %v1547 = vsel %vm1500, %v1475, 0
      %v1550 = vsel %vm1500, %v1476, 0
      %v1553 = vsel %vm1500, %v1477, 0
      %v1556 = vsel %vm1500, %v1478, 0
      %v1559 = vsel %vm1500, %v1479, 0
      %v1562 = vsel %vm1500, %v1480, 0
      %v1565 = vsel %vm1500, %v1481, 0
      %v1568 = vsel %vm1500, %v1482, 0
      %v1571 = vsel %vm1500, %v1483, 0
      %v1574 = vsel %vm1500, %v1484, 0
      %v1577 = vsel %vm1500, %v1485, 0
      %v1580 = vsel %vm1500, %v1486, 0
      %v1583 = vsel %vm1500, %v1487, 0
      %v1586 = vsel %vm1500, %v1488, 0
      %v1589 = vsel %vm1500, %v1489, 0
      %v1592 = vsel %vm1500, %v1490, 0
      %v1595 = vsel %vm1500, %v1491, 0
      %v1598 = vsel %vm1500, %v1492, 0
      %1600 = vmatprep.subr.mxu0 0.0
      %1601 = vmatpush1.xpose.msra.mxu0 %v1505
      %1602 = vmatprep.subr.mxu0 0.0
      %1603 = vmatpush1.xpose.msra.mxu0 %v1508
      %1604 = vmatprep.subr.mxu0 0.0
      %1605 = vmatpush1.xpose.msra.mxu0 %v1511
      %1606 = vmatprep.subr.mxu0 0.0
      %1607 = vmatpush1.xpose.msra.mxu0 %v1514
      %1608 = vmatprep.subr.mxu0 0.0
      %1609 = vmatpush1.xpose.msra.mxu0 %v1517
      %1610 = vmatprep.subr.mxu0 0.0
      %1611 = vmatpush1.xpose.msra.mxu0 %v1520
      %1612 = vmatprep.subr.mxu0 0.0
      %1613 = vmatpush1.xpose.msra.mxu0 %v1523
      %1614 = vmatprep.subr.mxu0 0.0
      %1615 = vmatpush1.xpose.msra.mxu0 %v1526
      %1616 = vmatprep.subr.mxu0 0.0
      %1617 = vmatpush1.xpose.msra.mxu0 %v1529
      %1618 = vmatprep.subr.mxu0 0.0
      %1619 = vmatpush1.xpose.msra.mxu0 %v1532
      %1620 = vmatprep.subr.mxu0 0.0
      %1621 = vmatpush1.xpose.msra.mxu0 %v1535
      %1622 = vmatprep.subr.mxu0 0.0
      %1623 = vmatpush1.xpose.msra.mxu0 %v1538
      %1624 = vmatprep.subr.mxu0 0.0
      %1625 = vmatpush1.xpose.msra.mxu0 %v1541
      %1626 = vmatprep.subr.mxu0 0.0
      %1627 = vmatpush1.xpose.msra.mxu0 %v1544
      %1628 = vmatprep.subr.mxu0 0.0
      %1629 = vmatpush1.xpose.msra.mxu0 %v1547
      %1630 = vmatprep.subr.mxu0 0.0
      %1631 = vmatpush1.xpose.msra.mxu0 %v1550
      %1632 = vmatprep.subr.mxu0 0.0
      %1633 = vmatpush1.xpose.msra.mxu0 %v1553
      %1634 = vmatprep.subr.mxu0 0.0
      %1635 = vmatpush1.xpose.msra.mxu0 %v1556
      %1636 = vmatprep.subr.mxu0 0.0
      %1637 = vmatpush1.xpose.msra.mxu0 %v1559
      %1638 = vmatprep.subr.mxu0 0.0
      %1639 = vmatpush1.xpose.msra.mxu0 %v1562
      %1640 = vmatprep.subr.mxu0 0.0
      %1641 = vmatpush1.xpose.msra.mxu0 %v1565
      %1642 = vmatprep.subr.mxu0 0.0
      %1643 = vmatpush1.xpose.msra.mxu0 %v1568
      %1644 = vmatprep.subr.mxu0 0.0
      %1645 = vmatpush1.xpose.msra.mxu0 %v1571
      %1646 = vmatprep.subr.mxu0 0.0
      %1647 = vmatpush1.xpose.msra.mxu0 %v1574
      %1648 = vmatprep.subr.mxu0 0.0
      %1649 = vmatpush1.xpose.msra.mxu0 %v1577
      %1650 = vmatprep.subr.mxu0 0.0
      %1651 = vmatpush1.xpose.msra.mxu0 %v1580
      %1652 = vmatprep.subr.mxu0 0.0
      %1653 = vmatpush1.xpose.msra.mxu0 %v1583
      %1654 = vmatprep.subr.mxu0 0.0
      %1655 = vmatpush1.xpose.msra.mxu0 %v1586
      %1656 = vmatprep.subr.mxu0 0.0
      %1657 = vmatpush1.xpose.msra.mxu0 %v1589
      %1658 = vmatprep.subr.mxu0 0.0
      %1659 = vmatpush1.xpose.msra.mxu0 %v1592
      %1660 = vmatprep.subr.mxu0 0.0
      %1661 = vmatpush1.xpose.msra.mxu0 %v1595
      %1662 = vmatprep.subr.mxu0 0.0
      %1663 = vmatpush1.xpose.msra.mxu0 %v1598
      %1664 = vmatprep.mubr.f32.mxu0 0.0
      %1665 = vmatmul.mubr.f32.gmra.mrb[0].mxu0 %v1502
      %v1666 = vpop.f32.mrb[0].mxu0
      %v1667 = vadd.f32 %v1498, %v1666
      %v1668 = vpop.f32.mrb[0].mxu0
      %v1669 = vadd.f32 %v1498, %v1668
      %1670 = vdwg.mxu0
      %s1671 = scalar_lea.vmem %s1, 4
      %v1672 = vld [vmem:[%s1671] sm:$0xf]
      %s1673 = scalar_lea.vmem %s2, 4
      %v1674 = vld [vmem:[%s1673] sm:$0xf]
      %1676 = vset.pattern.permute.xlu0 0
      %1677 = vperm.xlu0 %1676, %v1674
      %v1678 = vpop.permute.xlu0 %1677
      %v1681 = vsel %vm1500, %v1672, 0
      %1683 = vmatprep.subr.mxu0 0.0
      %1684 = vmatpush1.xpose.msra.mxu0 %v1505
      %1685 = vmatprep.subr.mxu0 0.0
      %1686 = vmatpush1.xpose.msra.mxu0 %v1508
      %1687 = vmatprep.subr.mxu0 0.0
      %1688 = vmatpush1.xpose.msra.mxu0 %v1511
      %1689 = vmatprep.subr.mxu0 0.0
      %1690 = vmatpush1.xpose.msra.mxu0 %v1514
      %1691 = vmatprep.subr.mxu0 0.0
      %1692 = vmatpush1.xpose.msra.mxu0 %v1517
      %1693 = vmatprep.subr.mxu0 0.0
      %1694 = vmatpush1.xpose.msra.mxu0 %v1520
      %1695 = vmatprep.subr.mxu0 0.0
      %1696 = vmatpush1.xpose.msra.mxu0 %v1523
      %1697 = vmatprep.subr.mxu0 0.0
      %1698 = vmatpush1.xpose.msra.mxu0 %v1526
      %1699 = vmatprep.subr.mxu0 0.0
      %1700 = vmatpush1.xpose.msra.mxu0 %v1529
      %1701 = vmatprep.subr.mxu0 0.0
      %1702 = vmatpush1.xpose.msra.mxu0 %v1532
      %1703 = vmatprep.subr.mxu0 0.0
      %1704 = vmatpush1.xpose.msra.mxu0 %v1535
      %1705 = vmatprep.subr.mxu0 0.0
      %1706 = vmatpush1.xpose.msra.mxu0 %v1538
      %1707 = vmatprep.subr.mxu0 0.0
      %1708 = vmatpush1.xpose.msra.mxu0 %v1541
      %1709 = vmatprep.subr.mxu0 0.0
      %1710 = vmatpush1.xpose.msra.mxu0 %v1544
      %1711 = vmatprep.subr.mxu0 0.0
      %1712 = vmatpush1.xpose.msra.mxu0 %v1547
      %1713 = vmatprep.subr.mxu0 0.0
      %1714 = vmatpush1.xpose.msra.mxu0 %v1550
      %1715 = vmatprep.subr.mxu0 0.0
      %1716 = vmatpush1.xpose.msra.mxu0 %v1553
      %1717 = vmatprep.subr.mxu0 0.0
      %1718 = vmatpush1.xpose.msra.mxu0 %v1556
      %1719 = vmatprep.subr.mxu0 0.0
      %1720 = vmatpush1.xpose.msra.mxu0 %v1559
      %1721 = vmatprep.subr.mxu0 0.0
      %1722 = vmatpush1.xpose.msra.mxu0 %v1562
      %1723 = vmatprep.subr.mxu0 0.0
      %1724 = vmatpush1.xpose.msra.mxu0 %v1565
      %1725 = vmatprep.subr.mxu0 0.0
      %1726 = vmatpush1.xpose.msra.mxu0 %v1568
      %1727 = vmatprep.subr.mxu0 0.0
      %1728 = vmatpush1.xpose.msra.mxu0 %v1571
      %1729 = vmatprep.subr.mxu0 0.0
      %1730 = vmatpush1.xpose.msra.mxu0 %v1574
      %1731 = vmatprep.subr.mxu0 0.0
      %1732 = vmatpush1.xpose.msra.mxu0 %v1577
      %1733 = vmatprep.subr.mxu0 0.0
      %1734 = vmatpush1.xpose.msra.mxu0 %v1580
      %1735 = vmatprep.subr.mxu0 0.0
      %1736 = vmatpush1.xpose.msra.mxu0 %v1583
      %1737 = vmatprep.subr.mxu0 0.0
      %1738 = vmatpush1.xpose.msra.mxu0 %v1586
      %1739 = vmatprep.subr.mxu0 0.0
      %1740 = vmatpush1.xpose.msra.mxu0 %v1589
      %1741 = vmatprep.subr.mxu0 0.0
      %1742 = vmatpush1.xpose.msra.mxu0 %v1592
      %1743 = vmatprep.subr.mxu0 0.0
      %1744 = vmatpush1.xpose.msra.mxu0 %v1595
      %1745 = vmatprep.subr.mxu0 0.0
      %1746 = vmatpush1.xpose.msra.mxu0 %v1598
      %1747 = vmatprep.mubr.f32.mxu0 0.0
      %1748 = vmatmul.mubr.f32.gmra.mrb[0].mxu0 %v1681
      %v1749 = vpop.f32.mrb[0].mxu0
      %v1750 = vadd.f32 %v1678, %v1749
      %v1751 = vpop.f32.mrb[0].mxu0
      %v1752 = vadd.f32 %v1678, %v1751
      %1753 = vdwg.mxu0
      %v1754 = vxor.u32 %v1750, 2147483648
      %v1755 = vxor.u32 %v1752, 2147483648
      %v1756 = vmul.f32 %v1754, 1.442695
      %v1757 = vpow.pop %v1756
      %v1758 = vmul.f32 %v1755, 1.442695
      %v1759 = vpow.pop %v1758
      %v1760 = vadd.f32 %v1757, 1.0
      %v1761 = vadd.f32 %v1759, 1.0
      %v1762 = vrcp.pop %v1760
      %v1763 = vmul.f32 1.0, %v1762
      %v1764 = vrcp.pop %v1761
      %v1765 = vmul.f32 1.0, %v1764
      %v1766 = vmul.f32 %v1667, %v1763
      %v1767 = vmul.f32 %v1669, %v1765
      %v1770 = vcombine.low %v1766, %v1767
      %1772 = vst [vmem:[%s170] sm:$0xff] %v1770
      %p1773 = scmp.lt.s32.totalorder %s14, 1
      %s1774 = scalar_select %p1773, %s14, 1
      %s1775 = smul.addr %s1774, 2
      %s1776 = smul.addr %s1775, 4
      %s1777 = scalar_lea.vmem %s3, %s1776
      // Predicated region
      $region33: #{conv_glu_forward.1} parent=31 // pred_check
        %p1778 = pneg %p100
      $region34: #{conv_glu_forward.1} parent=31 // pred_check_branch
        %1780 = sbr.rel (%p1778) target = $region36
      $region35: #{conv_glu_forward.1} parent=31 // pred_region
        _
      $region36: #{conv_glu_forward.1} parent=31 // pred_fallthru
        _
    $region32: #{conv_glu_forward.1} parent=5 // pred_fallthru
      _
    %p1781 = scmp.le.s32.totalorder 2, %s9
    // Predicated region
    $region37: #{conv_glu_forward.1} parent=5 // pred_check
      %p1782 = pneg %p1781
    $region38: #{conv_glu_forward.1} parent=5 // pred_check_branch
      %1784 = sbr.rel (%p1782) target = $region40
    $region39: #{conv_glu_forward.1} parent=5 // pred_region
      %s1785 = ssub.s32 %s9, 2
      // Predicated region
      $region41: #{conv_glu_forward.1} parent=39 // pred_check
        %p1786 = pneg %p106
      $region42: #{conv_glu_forward.1} parent=39 // pred_check_branch
        %1788 = sbr.rel (%p1786) target = $region44
      $region43: #{conv_glu_forward.1} parent=39 // pred_region
        %p1789 = scmp.lt.s32.totalorder %s15, 1
        %s1790 = scalar_select %p1789, %s15, 1
        %s1791 = smul.addr %s1790, 2
        %s1792 = smul.addr %s1791, 4
        %s1793 = scalar_lea.vmem %s3, %s1792
      $region44: #{conv_glu_forward.1} parent=39 // pred_fallthru
        _
    $region40: #{conv_glu_forward.1} parent=5 // pred_fallthru
      _
  $region6: #{conv_glu_forward.1} parent=0 // loop_footer
    %s13 = sadd.s32 1, %s9
  $region7: #{conv_glu_forward.1} parent=0 // loop_footer_branch
    %8 = sbr.rel target = $region3
  $region8: #{conv_glu_forward.1} parent=0 // loop_exit
    _

</llo_original>
